<compile_context>
chip_gen: v7x
topology: tpu7x:2x2x1
jax: 0.10.0
libtpu: 0.0.40
codegen_flags: <defaults>
</compile_context>

<pallas_src>
import functools

import jax
import jax.numpy as jnp
from jax.experimental import pallas as pl
from jax.experimental.pallas import tpu as pltpu


IN_DIM = 28 * 28     # 784
H1 = 512
H2 = 256
OUT = 1
LANE = 128


def _round_up(x, m):
    return (x + m - 1) // m * m


def _discriminator_kernel(x_ref, w1_ref, b1_ref, w2_ref, b2_ref,
                          w3_ref, b3_ref, o_ref):
    # x arrives as raw f32 (no wrapper pad/cast pass over HBM); cast to bf16
    # on the VPU right before feeding the MXU.
    x = x_ref[...].astype(jnp.bfloat16)

    # ---- Linear(784 -> 512), f32 accumulate, then LeakyReLU(0.2) as a
    #      packed-bf16 maximum (2 VALU ops/vreg instead of cmp+mul+select).
    h1 = jnp.dot(x, w1_ref[...],
                 preferred_element_type=jnp.float32) + b1_ref[...]
    h1 = h1.astype(jnp.bfloat16)
    h1 = jnp.maximum(h1, 0.2 * h1)

    # ---- Linear(512 -> 256) + LeakyReLU(0.2)
    h2 = jnp.dot(h1, w2_ref[...],
                 preferred_element_type=jnp.float32) + b2_ref[...]
    h2 = h2.astype(jnp.bfloat16)
    h2 = jnp.maximum(h2, 0.2 * h2)

    # ---- Linear(256 -> 1) + Sigmoid, lane-dense:
    #      (1, H2) contracted with (bt, H2) over H2 -> (1, bt) so the output
    #      store is a full 128-lane slab (batch on the lane axis).
    logit = jax.lax.dot_general(
        w3_ref[...], h2,
        dimension_numbers=(((1,), (1,)), ((), ())),
        preferred_element_type=jnp.float32) + b3_ref[...]
    o_ref[...] = jax.nn.sigmoid(logit).astype(o_ref.dtype)


@functools.partial(jax.jit, static_argnames=("batch_tile",))
def discriminator_forward(img, params, *, batch_tile=512):
    """img: (B, 1, 28, 28) float32 NCHW.  Returns validity: (B, 1) float32."""
    w1, b1, w2, b2, w3, b3 = params
    B = img.shape[0]
    x = img.reshape(B, IN_DIM)          # raw f32; no pad, no cast, no copy
    assert x.shape[1] == IN_DIM

    # Batch tile: 128-aligned, capped so the grid has >= 2 steps when the
    # batch allows it (megacore / v7x dual-TC sharding).  Large-batch v6e/v5e
    # callers can pass batch_tile=1024 to amortize per-step overhead.
    bt = max(LANE, min(batch_tile, _round_up(pl.cdiv(B, 2), LANE)))
    grid = (pl.cdiv(B, bt),)            # last block may be partial (masked)

    # Weights in bf16 (MXU-native); biases stay f32 for the accumulators.
    w1b = w1.astype(jnp.bfloat16)                      # (784, 512)
    w2b = w2.astype(jnp.bfloat16)                      # (512, 256)
    w3r = w3.reshape(1, H2).astype(jnp.bfloat16)       # (1, 256) row
    b1r = b1.reshape(1, H1).astype(jnp.float32)
    b2r = b2.reshape(1, H2).astype(jnp.float32)
    b3r = b3.reshape(1, OUT).astype(jnp.float32)

    def whole(shape):
        return pl.BlockSpec(shape, lambda i: tuple(0 for _ in shape))

    flops = 2 * B * (IN_DIM * H1 + H1 * H2 + H2 * OUT)
    bytes_accessed = (x.size * 4 + w1b.size * 2 + w2b.size * 2 + w3r.size * 2
                      + (b1r.size + b2r.size + b3r.size) * 4 + B * 4)

    out = pl.pallas_call(
        _discriminator_kernel,
        out_shape=jax.ShapeDtypeStruct((1, B), jnp.float32),
        grid=grid,
        in_specs=[
            # x tile: batch varies along the grid; K = 784 == full array dim.
            pl.BlockSpec((bt, IN_DIM), lambda i: (i, 0)),
            whole((IN_DIM, H1)),    # w1 (resident)
            whole((1, H1)),         # b1
            whole((H1, H2)),        # w2
            whole((1, H2)),         # b2
            whole((1, H2)),         # w3 row
            whole((1, OUT)),        # b3
        ],
        out_specs=pl.BlockSpec((1, bt), lambda i: (0, i)),  # lane-dense output
        compiler_params=pltpu.CompilerParams(
            dimension_semantics=("parallel",),
            vmem_limit_bytes=64 << 20),
        cost_estimate=pl.CostEstimate(
            flops=flops, transcendentals=B,
            bytes_accessed=bytes_accessed),
    )(x, w1b, b1r, w2b, b2r, w3r, b3r)

    return out[0, :, None]                              # (B, 1)


def init_params(key):
    """Deterministic init matching torch.nn.Linear default
    (uniform(-1/sqrt(fan_in), 1/sqrt(fan_in))), weights stored (in, out)."""
    ks = jax.random.split(key, 6)

    def linear(kw, kb, fan_in, fan_out):
        bound = 1.0 / jnp.sqrt(fan_in)
        w = jax.random.uniform(kw, (fan_in, fan_out), jnp.float32,
                               minval=-bound, maxval=bound)
        b = jax.random.uniform(kb, (1, fan_out), jnp.float32,
                               minval=-bound, maxval=bound)
        return w, b

    w1, b1 = linear(ks[0], ks[1], IN_DIM, H1)
    w2, b2 = linear(ks[2], ks[3], H1, H2)
    w3, b3 = linear(ks[4], ks[5], H2, OUT)
    return (w1, b1, w2, b2, w3, b3)


def reference_forward(img, params):
    """Plain-JAX f32 reference for correctness checking."""
    w1, b1, w2, b2, w3, b3 = params
    x = img.reshape(img.shape[0], -1)
    h = x @ w1 + b1
    h = jnp.where(h > 0, h, 0.2 * h)
    h = h @ w2 + b2
    h = jnp.where(h > 0, h, 0.2 * h)
    return jax.nn.sigmoid(h @ w3 + b3)


if __name__ == "__main__":
    key = jax.random.PRNGKey(0)
    k_img, k_params = jax.random.split(key)

    B = 8  # small demo batch (wrapper handles ragged/small batches internally)
    img = jax.random.normal(k_img, (B, 1, 28, 28), jnp.float32)
    params = init_params(k_params)

    out = discriminator_forward(img, params)
    out = jax.block_until_ready(out)

    ref = reference_forward(img, params)
    assert out.shape == (B, 1)
    # bf16 matmul operands / bf16 activations with f32 accumulation ->
    # relaxed tolerance (sigmoid outputs live in [0, 1]).
    assert jnp.allclose(out, ref, atol=2e-2), "mismatch vs reference"

    print("KERNEL_OK")
</pallas_src>

<mosaic_0001>
module attributes {stable_mosaic.version = 11 : i64} {
  func.func @_discriminator_kernel(%arg0: i32, %arg1: memref<128x784xf32, #tpu.memory_space<vmem>>, %arg2: memref<784x512xbf16, #tpu.memory_space<vmem>>, %arg3: memref<1x512xf32, #tpu.memory_space<vmem>>, %arg4: memref<512x256xbf16, #tpu.memory_space<vmem>>, %arg5: memref<1x256xf32, #tpu.memory_space<vmem>>, %arg6: memref<1x256xbf16, #tpu.memory_space<vmem>>, %arg7: memref<1x1xf32, #tpu.memory_space<vmem>>, %arg8: memref<1x128xf32, #tpu.memory_space<vmem>>) attributes {dimension_semantics = [#tpu.dimension_semantics<parallel>], iteration_bounds = array<i64: 1>, scalar_prefetch = 0 : i64, scratch_operands = 0 : i64, tpu.core_type = #tpu.core_type<tc>, window_params = [{transform_indices = @transform_0, window_bounds = array<i64: 128, 784>}, {pipeline_mode = #tpu.pipeline_mode<synchronous>, transform_indices = @transform_1, window_bounds = array<i64: 784, 512>}, {pipeline_mode = #tpu.pipeline_mode<synchronous>, transform_indices = @transform_2, window_bounds = array<i64: 1, 512>}, {pipeline_mode = #tpu.pipeline_mode<synchronous>, transform_indices = @transform_3, window_bounds = array<i64: 512, 256>}, {pipeline_mode = #tpu.pipeline_mode<synchronous>, transform_indices = @transform_4, window_bounds = array<i64: 1, 256>}, {pipeline_mode = #tpu.pipeline_mode<synchronous>, transform_indices = @transform_5, window_bounds = array<i64: 1, 256>}, {pipeline_mode = #tpu.pipeline_mode<synchronous>, transform_indices = @transform_6, window_bounds = array<i64: 1, 1>}, {transform_indices = @transform_7, window_bounds = array<i64: 1, 128>}]} {
    %c0 = arith.constant 0 : index
    %c0_0 = arith.constant 0 : index
    %0 = vector.load %arg1[%c0, %c0_0] : memref<128x784xf32, #tpu.memory_space<vmem>>, vector<128x784xf32>
    %1 = arith.truncf %0 : vector<128x784xf32> to vector<128x784xbf16>
    %c0_1 = arith.constant 0 : index
    %c0_2 = arith.constant 0 : index
    %2 = vector.load %arg2[%c0_1, %c0_2] : memref<784x512xbf16, #tpu.memory_space<vmem>>, vector<784x512xbf16>
    %cst = arith.constant dense<0.000000e+00> : vector<128x512xf32>
    %3 = tpu.matmul %1, %2, %cst {dimension_numbers = #tpu.dot_dimension_numbers<[1], [0], [0], [1], [0, 0, 1, 1], [], []>} : vector<128x784xbf16>, vector<784x512xbf16>, vector<128x512xf32> -> vector<128x512xf32>
    %c0_3 = arith.constant 0 : index
    %c0_4 = arith.constant 0 : index
    %4 = vector.load %arg3[%c0_3, %c0_4] : memref<1x512xf32, #tpu.memory_space<vmem>>, vector<1x512xf32>
    %5 = vector.broadcast %4 : vector<1x512xf32> to vector<128x512xf32>
    %6 = arith.addf %3, %5 : vector<128x512xf32>
    %7 = arith.truncf %6 : vector<128x512xf32> to vector<128x512xbf16>
    %cst_5 = arith.constant 2.001950e-01 : bf16
    %8 = vector.broadcast %cst_5 : bf16 to vector<128x512xbf16>
    %9 = arith.mulf %8, %7 : vector<128x512xbf16>
    %10 = arith.maximumf %7, %9 : vector<128x512xbf16>
    %c0_6 = arith.constant 0 : index
    %c0_7 = arith.constant 0 : index
    %11 = vector.load %arg4[%c0_6, %c0_7] : memref<512x256xbf16, #tpu.memory_space<vmem>>, vector<512x256xbf16>
    %cst_8 = arith.constant dense<0.000000e+00> : vector<128x256xf32>
    %12 = tpu.matmul %10, %11, %cst_8 {dimension_numbers = #tpu.dot_dimension_numbers<[1], [0], [0], [1], [0, 0, 1, 1], [], []>} : vector<128x512xbf16>, vector<512x256xbf16>, vector<128x256xf32> -> vector<128x256xf32>
    %c0_9 = arith.constant 0 : index
    %c0_10 = arith.constant 0 : index
    %13 = vector.load %arg5[%c0_9, %c0_10] : memref<1x256xf32, #tpu.memory_space<vmem>>, vector<1x256xf32>
    %14 = vector.broadcast %13 : vector<1x256xf32> to vector<128x256xf32>
    %15 = arith.addf %12, %14 : vector<128x256xf32>
    %16 = arith.truncf %15 : vector<128x256xf32> to vector<128x256xbf16>
    %cst_11 = arith.constant 2.001950e-01 : bf16
    %17 = vector.broadcast %cst_11 : bf16 to vector<128x256xbf16>
    %18 = arith.mulf %17, %16 : vector<128x256xbf16>
    %19 = arith.maximumf %16, %18 : vector<128x256xbf16>
    %c0_12 = arith.constant 0 : index
    %c0_13 = arith.constant 0 : index
    %20 = vector.load %arg6[%c0_12, %c0_13] : memref<1x256xbf16, #tpu.memory_space<vmem>>, vector<1x256xbf16>
    %cst_14 = arith.constant dense<0.000000e+00> : vector<1x128xf32>
    %21 = tpu.matmul %20, %19, %cst_14 {dimension_numbers = #tpu.dot_dimension_numbers<[1], [1], [0], [0], [0, 0, 1, 0], [], []>} : vector<1x256xbf16>, vector<128x256xbf16>, vector<1x128xf32> -> vector<1x128xf32>
    %c0_15 = arith.constant 0 : index
    %c0_16 = arith.constant 0 : index
    %22 = vector.load %arg7[%c0_15, %c0_16] : memref<1x1xf32, #tpu.memory_space<vmem>>, vector<1x1xf32>
    %23 = vector.broadcast %22 : vector<1x1xf32> to vector<1x128xf32>
    %24 = arith.addf %21, %23 : vector<1x128xf32>
    %25 = arith.negf %24 : vector<1x128xf32>
    %26 = math.exp %25 : vector<1x128xf32>
    %cst_17 = arith.constant 1.000000e+00 : f32
    %27 = vector.broadcast %cst_17 : f32 to vector<1x128xf32>
    %28 = arith.addf %27, %26 : vector<1x128xf32>
    %29 = arith.divf %27, %28 : vector<1x128xf32>
    %c0_18 = arith.constant 0 : index
    %c0_19 = arith.constant 0 : index
    %30 = vector.load %arg8[%c0_18, %c0_19] : memref<1x128xf32, #tpu.memory_space<vmem>>, vector<1x128xf32>
    tpu.vector_store %arg8[%c0_18, %c0_19], %29 {strides = array<i32>} : memref<1x128xf32, #tpu.memory_space<vmem>>, vector<1x128xf32>,
    return
  }
  func.func @transform_0(%arg0: i32) -> (i32, i32) {
    %c0_i32 = arith.constant 0 : i32
    %c0_i32_0 = arith.constant 0 : i32
    return %arg0, %c0_i32 : i32, i32
  }
  func.func @transform_1(%arg0: i32) -> (i32, i32) {
    %c0_i32 = arith.constant 0 : i32
    %c0_i32_0 = arith.constant 0 : i32
    %c0_i32_1 = arith.constant 0 : i32
    return %c0_i32, %c0_i32_0 : i32, i32
  }
  func.func @transform_2(%arg0: i32) -> (i32, i32) {
    %c0_i32 = arith.constant 0 : i32
    %c0_i32_0 = arith.constant 0 : i32
    %c0_i32_1 = arith.constant 0 : i32
    return %c0_i32, %c0_i32_0 : i32, i32
  }
  func.func @transform_3(%arg0: i32) -> (i32, i32) {
    %c0_i32 = arith.constant 0 : i32
    %c0_i32_0 = arith.constant 0 : i32
    %c0_i32_1 = arith.constant 0 : i32
    return %c0_i32, %c0_i32_0 : i32, i32
  }
  func.func @transform_4(%arg0: i32) -> (i32, i32) {
    %c0_i32 = arith.constant 0 : i32
    %c0_i32_0 = arith.constant 0 : i32
    %c0_i32_1 = arith.constant 0 : i32
    return %c0_i32, %c0_i32_0 : i32, i32
  }
  func.func @transform_5(%arg0: i32) -> (i32, i32) {
    %c0_i32 = arith.constant 0 : i32
    %c0_i32_0 = arith.constant 0 : i32
    %c0_i32_1 = arith.constant 0 : i32
    return %c0_i32, %c0_i32_0 : i32, i32
  }
  func.func @transform_6(%arg0: i32) -> (i32, i32) {
    %c0_i32 = arith.constant 0 : i32
    %c0_i32_0 = arith.constant 0 : i32
    %c0_i32_1 = arith.constant 0 : i32
    return %c0_i32, %c0_i32_0 : i32, i32
  }
  func.func @transform_7(%arg0: i32) -> (i32, i32) {
    %c0_i32 = arith.constant 0 : i32
    %c0_i32_0 = arith.constant 0 : i32
    return %c0_i32, %arg0 : i32, i32
  }
}

</mosaic_0001>

<llo_original>
// kernel: discriminator_forward.1
$region0: #{discriminator_forward.1}
  #allocation0 [shape = 'u32[]', space=smem, size = 0x4, offset = 0x4, fixed_abs, tag = 'smem constant byte address 0x4 - core index']
  #allocation1 [shape = 'u32[144,128]{1,0:T(1,128)}', space=vmem, size = 0x12000, scoped, tag = 'internal scratch']
  #allocation2 [shape = 'f32[1,1]{1,0:T(1,128)S(1)}', space=vmem, size = 0x200, scoped, tag = 'scoped memory for discriminator_forward.1']
  %s0 = inlined_call_operand.hbm [shape: f32[8,784], index: 0, kind: input, shape index: {}]
  %s1 = inlined_call_operand.hbm [shape: bf16[784,512], index: 1, kind: input, shape index: {}]
  %s2 = inlined_call_operand.hbm [shape: f32[1,512], index: 2, kind: input, shape index: {}]
  %s3 = inlined_call_operand.hbm [shape: bf16[512,256], index: 3, kind: input, shape index: {}]
  %s4 = inlined_call_operand.hbm [shape: f32[1,256], index: 4, kind: input, shape index: {}]
  %s5 = inlined_call_operand.hbm [shape: bf16[1,256], index: 5, kind: input, shape index: {}]
  %s6 = inlined_call_operand.<no memory space> [shape: f32[1,1], index: 6, kind: input, shape index: {}]
  %s7 = inlined_call_operand.hbm [shape: f32[1,8], index: 7, kind: output, shape index: {}]
  %s8 = sld [smem:[#allocation0]]
  $region62: #{discriminator_forward.1} parent=0
    _
  %s10 = ssub.s32 1, %s8
  %s11 = scalar_select 0, %s10, %s8
  %v12 = vstv %s6
  %13 = vst [vmem:[#allocation2] sm:$0x1] %v12
  $region1: #{discriminator_forward.1} parent=0
    #allocation3 [shape = 'u8[458752]{0}', space=vmem, size = 0x70000, scoped, tag = 'input window, operand 0, single buffered']
    #allocation4 [shape = 's32[1]{0}', space=sflag, size = 0x4, scoped, tag = 'scoped memory for discriminator_forward.1']
    #allocation5 [shape = 's32[1]{0}', space=sflag, size = 0x4, scoped, tag = 'scoped memory for discriminator_forward.1']
    #allocation6 [shape = 'u8[802816]{0}', space=vmem, size = 0xc4000, scoped, tag = 'input window, operand 1, single buffered']
    #allocation7 [shape = 's32[1]{0}', space=sflag, size = 0x4, scoped, tag = 'scoped memory for discriminator_forward.1']
    #allocation8 [shape = 'u8[2048]{0}', space=vmem, size = 0x800, scoped, tag = 'input window, operand 2, single buffered']
    #allocation9 [shape = 'u8[262144]{0}', space=vmem, size = 0x40000, scoped, tag = 'input window, operand 3, single buffered']
    #allocation10 [shape = 's32[1]{0}', space=sflag, size = 0x4, scoped, tag = 'scoped memory for discriminator_forward.1']
    #allocation11 [shape = 'u8[1024]{0}', space=vmem, size = 0x400, scoped, tag = 'input window, operand 4, single buffered']
    #allocation12 [shape = 'u8[1024]{0}', space=vmem, size = 0x400, scoped, tag = 'input window, operand 5, single buffered']
    #allocation13 [shape = 's32[1]{0}', space=sflag, size = 0x4, scoped, tag = 'scoped memory for discriminator_forward.1']
    #allocation14 [shape = 'u8[512]{0}', space=vmem, size = 0x400, scoped, tag = 'output window, operand 0, single buffered']
    %14 = vsyncpa [#allocation4], 0
    %15 = vsyncpa [#allocation7], 0
    %16 = vsyncpa [#allocation10], 0
    %17 = vsyncpa [#allocation13], 0
    %18 = vsyncpa [#allocation5], 0
    // Predicated region
    $region2: #{discriminator_forward.1} parent=1 // pred_check
      _
    $region3: #{discriminator_forward.1} parent=1 // pred_check_branch
      %20 = sbr.rel (0) target = $region5
    $region4: #{discriminator_forward.1} parent=1 // pred_region
      %s22 = ssub.s32 14336, 896
      %23 = vsyncadd [#allocation4], %s22
      %s24 = sshll.u32 [#allocation3], 4
      %s25 = int_to_ptr.vmem [resolvable:$true] %s24
      %30 = dma.hbm_to_vmem [thread:$0]  %s0, 896, %s25, [#allocation4], 896, 896, 56
    $region5: #{discriminator_forward.1} parent=1 // pred_fallthru
      _
    // Predicated region
    $region6: #{discriminator_forward.1} parent=1 // pred_check
      _
    $region7: #{discriminator_forward.1} parent=1 // pred_check_branch
      %32 = sbr.rel (0) target = $region9
    $region8: #{discriminator_forward.1} parent=1 // pred_region
      %s34 = ssub.s32 25088, 25088
      %35 = vsyncadd [#allocation7], %s34
      %s36 = sshll.u32 [#allocation6], 4
      %s37 = int_to_ptr.vmem [resolvable:$true] %s36
      %42 = dma.hbm_to_vmem [thread:$0]  %s1, 25088, %s37, [#allocation7], 256, 256, 16
    $region9: #{discriminator_forward.1} parent=1 // pred_fallthru
      _
    // Predicated region
    $region10: #{discriminator_forward.1} parent=1 // pred_check
      _
    $region11: #{discriminator_forward.1} parent=1 // pred_check_branch
      %44 = sbr.rel (0) target = $region13
    $region12: #{discriminator_forward.1} parent=1 // pred_region
      %s46 = ssub.s32 64, 64
      %47 = vsyncadd [#allocation7], %s46
      %s49 = sshll.u32 [#allocation8], 4
      %s50 = int_to_ptr.vmem [resolvable:$true] %s49
      %52 = dma.hbm_to_vmem [thread:$0]  %s2, 64, %s50, [#allocation7]
    $region13: #{discriminator_forward.1} parent=1 // pred_fallthru
      _
    // Predicated region
    $region14: #{discriminator_forward.1} parent=1 // pred_check
      _
    $region15: #{discriminator_forward.1} parent=1 // pred_check_branch
      %54 = sbr.rel (0) target = $region17
    $region16: #{discriminator_forward.1} parent=1 // pred_region
      %s56 = ssub.s32 8192, 8192
      %57 = vsyncadd [#allocation10], %s56
      %s58 = sshll.u32 [#allocation9], 4
      %s59 = int_to_ptr.vmem [resolvable:$true] %s58
      %64 = dma.hbm_to_vmem [thread:$0]  %s3, 8192, %s59, [#allocation10], 128, 128, 8
    $region17: #{discriminator_forward.1} parent=1 // pred_fallthru
      _
    // Predicated region
    $region18: #{discriminator_forward.1} parent=1 // pred_check
      _
    $region19: #{discriminator_forward.1} parent=1 // pred_check_branch
      %66 = sbr.rel (0) target = $region21
    $region20: #{discriminator_forward.1} parent=1 // pred_region
      %s68 = ssub.s32 32, 32
      %69 = vsyncadd [#allocation10], %s68
      %s71 = sshll.u32 [#allocation11], 4
      %s72 = int_to_ptr.vmem [resolvable:$true] %s71
      %74 = dma.hbm_to_vmem [thread:$0]  %s4, 32, %s72, [#allocation10]
    $region21: #{discriminator_forward.1} parent=1 // pred_fallthru
      _
    // Predicated region
    $region22: #{discriminator_forward.1} parent=1 // pred_check
      _
    $region23: #{discriminator_forward.1} parent=1 // pred_check_branch
      %76 = sbr.rel (0) target = $region25
    $region24: #{discriminator_forward.1} parent=1 // pred_region
      %s78 = ssub.s32 32, 32
      %79 = vsyncadd [#allocation13], %s78
      %s81 = sshll.u32 [#allocation12], 4
      %s82 = int_to_ptr.vmem [resolvable:$true] %s81
      %84 = dma.hbm_to_vmem [thread:$0]  %s5, 32, %s82, [#allocation13]
    $region25: #{discriminator_forward.1} parent=1 // pred_fallthru
      _
    // Predicated region
    $region26: #{discriminator_forward.1} parent=1 // pred_check
      _
    $region27: #{discriminator_forward.1} parent=1 // pred_check_branch
      %86 = sbr.rel (0) target = $region29
    $region28: #{discriminator_forward.1} parent=1 // pred_region
      _
    $region29: #{discriminator_forward.1} parent=1 // pred_fallthru
      _
    // Predicated region
    $region30: #{discriminator_forward.1} parent=1 // pred_check
      _
    $region31: #{discriminator_forward.1} parent=1 // pred_check_branch
      %88 = sbr.rel (0) target = $region33
    $region32: #{discriminator_forward.1} parent=1 // pred_region
      %89 = dma.done [#allocation4], 14336
    $region33: #{discriminator_forward.1} parent=1 // pred_fallthru
      _
    // Predicated region
    $region34: #{discriminator_forward.1} parent=1 // pred_check
      _
    $region35: #{discriminator_forward.1} parent=1 // pred_check_branch
      %91 = sbr.rel (0) target = $region37
    $region36: #{discriminator_forward.1} parent=1 // pred_region
      %92 = dma.done [#allocation7], 25088
    $region37: #{discriminator_forward.1} parent=1 // pred_fallthru
      _
    // Predicated region
    $region38: #{discriminator_forward.1} parent=1 // pred_check
      _
    $region39: #{discriminator_forward.1} parent=1 // pred_check_branch
      %94 = sbr.rel (0) target = $region41
    $region40: #{discriminator_forward.1} parent=1 // pred_region
      %95 = dma.done [#allocation7], 64
    $region41: #{discriminator_forward.1} parent=1 // pred_fallthru
      _
    // Predicated region
    $region42: #{discriminator_forward.1} parent=1 // pred_check
      _
    $region43: #{discriminator_forward.1} parent=1 // pred_check_branch
      %97 = sbr.rel (0) target = $region45
    $region44: #{discriminator_forward.1} parent=1 // pred_region
      %98 = dma.done [#allocation10], 8192
    $region45: #{discriminator_forward.1} parent=1 // pred_fallthru
      _
    // Predicated region
    $region46: #{discriminator_forward.1} parent=1 // pred_check
      _
    $region47: #{discriminator_forward.1} parent=1 // pred_check_branch
      %100 = sbr.rel (0) target = $region49
    $region48: #{discriminator_forward.1} parent=1 // pred_region
      %101 = dma.done [#allocation10], 32
    $region49: #{discriminator_forward.1} parent=1 // pred_fallthru
      _
    // Predicated region
    $region50: #{discriminator_forward.1} parent=1 // pred_check
      _
    $region51: #{discriminator_forward.1} parent=1 // pred_check_branch
      %103 = sbr.rel (0) target = $region53
    $region52: #{discriminator_forward.1} parent=1 // pred_region
      %104 = dma.done [#allocation13], 32
    $region53: #{discriminator_forward.1} parent=1 // pred_fallthru
      _
    %v107 = vld [vmem:[#allocation3] sm:$0xff]
    %v108 = vld [vmem:[#allocation3 + $0x8] sm:$0xff]
    %v109 = vld [vmem:[#allocation3 + $0x10] sm:$0xff]
    %v110 = vld [vmem:[#allocation3 + $0x18] sm:$0xff]
    %v111 = vld [vmem:[#allocation3 + $0x20] sm:$0xff]
    %v112 = vld [vmem:[#allocation3 + $0x28] sm:$0xff]
    %v113 = vld [vmem:[#allocation3 + $0x30] sm:$0xff]
    %v114 = vld [vmem:[#allocation3 + $0x38] sm:$0xff]
    %v115 = vld [vmem:[#allocation3 + $0x40] sm:$0xff]
    %v116 = vld [vmem:[#allocation3 + $0x48] sm:$0xff]
    %v117 = vld [vmem:[#allocation3 + $0x50] sm:$0xff]
    %v118 = vld [vmem:[#allocation3 + $0x58] sm:$0xff]
    %v119 = vld [vmem:[#allocation3 + $0x60] sm:$0xff]
    %v120 = vld [vmem:[#allocation3 + $0x68] sm:$0xff]
    %v121 = vld [vmem:[#allocation3 + $0x70] sm:$0xff]
    %v122 = vld [vmem:[#allocation3 + $0x78] sm:$0xff]
    %v123 = vld [vmem:[#allocation3 + $0x80] sm:$0xff]
    %v124 = vld [vmem:[#allocation3 + $0x88] sm:$0xff]
    %v125 = vld [vmem:[#allocation3 + $0x90] sm:$0xff]
    %v126 = vld [vmem:[#allocation3 + $0x98] sm:$0xff]
    %v127 = vld [vmem:[#allocation3 + $0xa0] sm:$0xff]
    %v128 = vld [vmem:[#allocation3 + $0xa8] sm:$0xff]
    %v129 = vld [vmem:[#allocation3 + $0xb0] sm:$0xff]
    %v130 = vld [vmem:[#allocation3 + $0xb8] sm:$0xff]
    %v131 = vld [vmem:[#allocation3 + $0xc0] sm:$0xff]
    %v132 = vld [vmem:[#allocation3 + $0xc8] sm:$0xff]
    %v133 = vld [vmem:[#allocation3 + $0xd0] sm:$0xff]
    %v134 = vld [vmem:[#allocation3 + $0xd8] sm:$0xff]
    %v135 = vld [vmem:[#allocation3 + $0xe0] sm:$0xff]
    %v136 = vld [vmem:[#allocation3 + $0xe8] sm:$0xff]
    %v137 = vld [vmem:[#allocation3 + $0xf0] sm:$0xff]
    %v138 = vld [vmem:[#allocation3 + $0xf8] sm:$0xff]
    %v139 = vld [vmem:[#allocation3 + $0x100] sm:$0xff]
    %v140 = vld [vmem:[#allocation3 + $0x108] sm:$0xff]
    %v141 = vld [vmem:[#allocation3 + $0x110] sm:$0xff]
    %v142 = vld [vmem:[#allocation3 + $0x118] sm:$0xff]
    %v143 = vld [vmem:[#allocation3 + $0x120] sm:$0xff]
    %v144 = vld [vmem:[#allocation3 + $0x128] sm:$0xff]
    %v145 = vld [vmem:[#allocation3 + $0x130] sm:$0xff]
    %v146 = vld [vmem:[#allocation3 + $0x138] sm:$0xff]
    %v147 = vld [vmem:[#allocation3 + $0x140] sm:$0xff]
    %v148 = vld [vmem:[#allocation3 + $0x148] sm:$0xff]
    %v149 = vld [vmem:[#allocation3 + $0x150] sm:$0xff]
    %v150 = vld [vmem:[#allocation3 + $0x158] sm:$0xff]
    %v151 = vld [vmem:[#allocation3 + $0x160] sm:$0xff]
    %v152 = vld [vmem:[#allocation3 + $0x168] sm:$0xff]
    %v153 = vld [vmem:[#allocation3 + $0x170] sm:$0xff]
    %v154 = vld [vmem:[#allocation3 + $0x178] sm:$0xff]
    %v155 = vld [vmem:[#allocation3 + $0x180] sm:$0xff]
    %v156 = vld [vmem:[#allocation3 + $0x188] sm:$0xff]
    %v157 = vld [vmem:[#allocation3 + $0x190] sm:$0xff]
    %v158 = vld [vmem:[#allocation3 + $0x198] sm:$0xff]
    %v159 = vld [vmem:[#allocation3 + $0x1a0] sm:$0xff]
    %v160 = vld [vmem:[#allocation3 + $0x1a8] sm:$0xff]
    %v161 = vld [vmem:[#allocation3 + $0x1b0] sm:$0xff]
    %v162 = vld [vmem:[#allocation3 + $0x1b8] sm:$0xff]
    %v163 = vld [vmem:[#allocation3 + $0x1c0] sm:$0xff]
    %v164 = vld [vmem:[#allocation3 + $0x1c8] sm:$0xff]
    %v165 = vld [vmem:[#allocation3 + $0x1d0] sm:$0xff]
    %v166 = vld [vmem:[#allocation3 + $0x1d8] sm:$0xff]
    %v167 = vld [vmem:[#allocation3 + $0x1e0] sm:$0xff]
    %v168 = vld [vmem:[#allocation3 + $0x1e8] sm:$0xff]
    %v169 = vld [vmem:[#allocation3 + $0x1f0] sm:$0xff]
    %v170 = vld [vmem:[#allocation3 + $0x1f8] sm:$0xff]
    %v171 = vld [vmem:[#allocation3 + $0x200] sm:$0xff]
    %v172 = vld [vmem:[#allocation3 + $0x208] sm:$0xff]
    %v173 = vld [vmem:[#allocation3 + $0x210] sm:$0xff]
    %v174 = vld [vmem:[#allocation3 + $0x218] sm:$0xff]
    %v175 = vld [vmem:[#allocation3 + $0x220] sm:$0xff]
    %v176 = vld [vmem:[#allocation3 + $0x228] sm:$0xff]
    %v177 = vld [vmem:[#allocation3 + $0x230] sm:$0xff]
    %v178 = vld [vmem:[#allocation3 + $0x238] sm:$0xff]
    %v179 = vld [vmem:[#allocation3 + $0x240] sm:$0xff]
    %v180 = vld [vmem:[#allocation3 + $0x248] sm:$0xff]
    %v181 = vld [vmem:[#allocation3 + $0x250] sm:$0xff]
    %v182 = vld [vmem:[#allocation3 + $0x258] sm:$0xff]
    %v183 = vld [vmem:[#allocation3 + $0x260] sm:$0xff]
    %v184 = vld [vmem:[#allocation3 + $0x268] sm:$0xff]
    %v185 = vld [vmem:[#allocation3 + $0x270] sm:$0xff]
    %v186 = vld [vmem:[#allocation3 + $0x278] sm:$0xff]
    %v187 = vld [vmem:[#allocation3 + $0x280] sm:$0xff]
    %v188 = vld [vmem:[#allocation3 + $0x288] sm:$0xff]
    %v189 = vld [vmem:[#allocation3 + $0x290] sm:$0xff]
    %v190 = vld [vmem:[#allocation3 + $0x298] sm:$0xff]
    %v191 = vld [vmem:[#allocation3 + $0x2a0] sm:$0xff]
    %v192 = vld [vmem:[#allocation3 + $0x2a8] sm:$0xff]
    %v193 = vld [vmem:[#allocation3 + $0x2b0] sm:$0xff]
    %v194 = vld [vmem:[#allocation3 + $0x2b8] sm:$0xff]
    %v195 = vld [vmem:[#allocation3 + $0x2c0] sm:$0xff]
    %v196 = vld [vmem:[#allocation3 + $0x2c8] sm:$0xff]
    %v197 = vld [vmem:[#allocation3 + $0x2d0] sm:$0xff]
    %v198 = vld [vmem:[#allocation3 + $0x2d8] sm:$0xff]
    %v199 = vld [vmem:[#allocation3 + $0x2e0] sm:$0xff]
    %v200 = vld [vmem:[#allocation3 + $0x2e8] sm:$0xff]
    %v201 = vld [vmem:[#allocation3 + $0x2f0] sm:$0xff]
    %v202 = vld [vmem:[#allocation3 + $0x2f8] sm:$0xff]
    %v203 = vld [vmem:[#allocation3 + $0x300] sm:$0xff]
    %v204 = vld [vmem:[#allocation3 + $0x308] sm:$0xff]
    %v205 = vld [vmem:[#allocation3 + $0x310] sm:$0xff]
    %v206 = vld [vmem:[#allocation3 + $0x318] sm:$0xff]
    %v207 = vld [vmem:[#allocation3 + $0x320] sm:$0xff]
    %v208 = vld [vmem:[#allocation3 + $0x328] sm:$0xff]
    %v209 = vld [vmem:[#allocation3 + $0x330] sm:$0xff]
    %v210 = vld [vmem:[#allocation3 + $0x338] sm:$0xff]
    %v211 = vld [vmem:[#allocation3 + $0x340] sm:$0xff]
    %v212 = vld [vmem:[#allocation3 + $0x348] sm:$0xff]
    %v213 = vld [vmem:[#allocation3 + $0x350] sm:$0xff]
    %v214 = vld [vmem:[#allocation3 + $0x358] sm:$0xff]
    %v215 = vld [vmem:[#allocation3 + $0x360] sm:$0xff]
    %v216 = vld [vmem:[#allocation3 + $0x368] sm:$0xff]
    %v217 = vld [vmem:[#allocation3 + $0x370] sm:$0xff]
    %v218 = vld [vmem:[#allocation3 + $0x378] sm:$0xff]
    %v219 = vpack.c.bf16 %v114, %v107
    %v220 = vpack.c.bf16 %v115, %v108
    %v221 = vpack.c.bf16 %v116, %v109
    %v222 = vpack.c.bf16 %v117, %v110
    %v223 = vpack.c.bf16 %v118, %v111
    %v224 = vpack.c.bf16 %v119, %v112
    %v225 = vpack.c.bf16 %v120, %v113
    %v226 = vpack.c.bf16 %v128, %v121
    %v227 = vpack.c.bf16 %v129, %v122
    %v228 = vpack.c.bf16 %v130, %v123
    %v229 = vpack.c.bf16 %v131, %v124
    %v230 = vpack.c.bf16 %v132, %v125
    %v231 = vpack.c.bf16 %v133, %v126
    %v232 = vpack.c.bf16 %v134, %v127
    %v233 = vpack.c.bf16 %v142, %v135
    %v234 = vpack.c.bf16 %v143, %v136
    %v235 = vpack.c.bf16 %v144, %v137
    %v236 = vpack.c.bf16 %v145, %v138
    %v237 = vpack.c.bf16 %v146, %v139
    %v238 = vpack.c.bf16 %v147, %v140
    %v239 = vpack.c.bf16 %v148, %v141
    %v240 = vpack.c.bf16 %v156, %v149
    %v241 = vpack.c.bf16 %v157, %v150
    %v242 = vpack.c.bf16 %v158, %v151
    %v243 = vpack.c.bf16 %v159, %v152
    %v244 = vpack.c.bf16 %v160, %v153
    %v245 = vpack.c.bf16 %v161, %v154
    %v246 = vpack.c.bf16 %v162, %v155
    %v247 = vpack.c.bf16 %v170, %v163
    %v248 = vpack.c.bf16 %v171, %v164
    %v249 = vpack.c.bf16 %v172, %v165
    %v250 = vpack.c.bf16 %v173, %v166
    %v251 = vpack.c.bf16 %v174, %v167
    %v252 = vpack.c.bf16 %v175, %v168
    %v253 = vpack.c.bf16 %v176, %v169
    %v254 = vpack.c.bf16 %v184, %v177
    %v255 = vpack.c.bf16 %v185, %v178
    %v256 = vpack.c.bf16 %v186, %v179
    %v257 = vpack.c.bf16 %v187, %v180
    %v258 = vpack.c.bf16 %v188, %v181
    %v259 = vpack.c.bf16 %v189, %v182
    %v260 = vpack.c.bf16 %v190, %v183
    %v261 = vpack.c.bf16 %v198, %v191
    %v262 = vpack.c.bf16 %v199, %v192
    %v263 = vpack.c.bf16 %v200, %v193
    %v264 = vpack.c.bf16 %v201, %v194
    %v265 = vpack.c.bf16 %v202, %v195
    %v266 = vpack.c.bf16 %v203, %v196
    %v267 = vpack.c.bf16 %v204, %v197
    %v268 = vpack.c.bf16 %v212, %v205
    %v269 = vpack.c.bf16 %v213, %v206
    %v270 = vpack.c.bf16 %v214, %v207
    %v271 = vpack.c.bf16 %v215, %v208
    %v272 = vpack.c.bf16 %v216, %v209
    %v273 = vpack.c.bf16 %v217, %v210
    %v274 = vpack.c.bf16 %v218, %v211
    %v275 = vld [vmem:[#allocation6] sm:$0xff]
    %v276 = vld [vmem:[#allocation6 + $0x8] sm:$0xff]
    %v277 = vld [vmem:[#allocation6 + $0x10] sm:$0xff]
    %v278 = vld [vmem:[#allocation6 + $0x18] sm:$0xff]
    %v279 = vld [vmem:[#allocation6 + $0x20] sm:$0xff]
    %v280 = vld [vmem:[#allocation6 + $0x28] sm:$0xff]
    %v281 = vld [vmem:[#allocation6 + $0x30] sm:$0xff]
    %v282 = vld [vmem:[#allocation6 + $0x38] sm:$0xff]
    %v283 = vld [vmem:[#allocation6 + $0x40] sm:$0xff]
    %v284 = vld [vmem:[#allocation6 + $0x48] sm:$0xff]
    %v285 = vld [vmem:[#allocation6 + $0x50] sm:$0xff]
    %v286 = vld [vmem:[#allocation6 + $0x58] sm:$0xff]
    %v287 = vld [vmem:[#allocation6 + $0x60] sm:$0xff]
    %v288 = vld [vmem:[#allocation6 + $0x68] sm:$0xff]
    %v289 = vld [vmem:[#allocation6 + $0x70] sm:$0xff]
    %v290 = vld [vmem:[#allocation6 + $0x78] sm:$0xff]
    %v291 = vld [vmem:[#allocation6 + $0x80] sm:$0xff]
    %v292 = vld [vmem:[#allocation6 + $0x88] sm:$0xff]
    %v293 = vld [vmem:[#allocation6 + $0x90] sm:$0xff]
    %v294 = vld [vmem:[#allocation6 + $0x98] sm:$0xff]
    %v295 = vld [vmem:[#allocation6 + $0xa0] sm:$0xff]
    %v296 = vld [vmem:[#allocation6 + $0xa8] sm:$0xff]
    %v297 = vld [vmem:[#allocation6 + $0xb0] sm:$0xff]
    %v298 = vld [vmem:[#allocation6 + $0xb8] sm:$0xff]
    %v299 = vld [vmem:[#allocation6 + $0xc0] sm:$0xff]
    %v300 = vld [vmem:[#allocation6 + $0xc8] sm:$0xff]
    %v301 = vld [vmem:[#allocation6 + $0xd0] sm:$0xff]
    %v302 = vld [vmem:[#allocation6 + $0xd8] sm:$0xff]
    %v303 = vld [vmem:[#allocation6 + $0xe0] sm:$0xff]
    %v304 = vld [vmem:[#allocation6 + $0xe8] sm:$0xff]
    %v305 = vld [vmem:[#allocation6 + $0xf0] sm:$0xff]
    %v306 = vld [vmem:[#allocation6 + $0xf8] sm:$0xff]
    %v307 = vld [vmem:[#allocation6 + $0x100] sm:$0xff]
    %v308 = vld [vmem:[#allocation6 + $0x108] sm:$0xff]
    %v309 = vld [vmem:[#allocation6 + $0x110] sm:$0xff]
    %v310 = vld [vmem:[#allocation6 + $0x118] sm:$0xff]
    %v311 = vld [vmem:[#allocation6 + $0x120] sm:$0xff]
    %v312 = vld [vmem:[#allocation6 + $0x128] sm:$0xff]
    %v313 = vld [vmem:[#allocation6 + $0x130] sm:$0xff]
    %v314 = vld [vmem:[#allocation6 + $0x138] sm:$0xff]
    %v315 = vld [vmem:[#allocation6 + $0x140] sm:$0xff]
    %v316 = vld [vmem:[#allocation6 + $0x148] sm:$0xff]
    %v317 = vld [vmem:[#allocation6 + $0x150] sm:$0xff]
    %v318 = vld [vmem:[#allocation6 + $0x158] sm:$0xff]
    %v319 = vld [vmem:[#allocation6 + $0x160] sm:$0xff]
    %v320 = vld [vmem:[#allocation6 + $0x168] sm:$0xff]
    %v321 = vld [vmem:[#allocation6 + $0x170] sm:$0xff]
    %v322 = vld [vmem:[#allocation6 + $0x178] sm:$0xff]
    %v323 = vld [vmem:[#allocation6 + $0x180] sm:$0xff]
    %v324 = vld [vmem:[#allocation6 + $0x188] sm:$0xff]
    %v325 = vld [vmem:[#allocation6 + $0x190] sm:$0xff]
    %v326 = vld [vmem:[#allocation6 + $0x198] sm:$0xff]
    %v327 = vld [vmem:[#allocation6 + $0x1a0] sm:$0xff]
    %v328 = vld [vmem:[#allocation6 + $0x1a8] sm:$0xff]
    %v329 = vld [vmem:[#allocation6 + $0x1b0] sm:$0xff]
    %v330 = vld [vmem:[#allocation6 + $0x1b8] sm:$0xff]
    %v331 = vld [vmem:[#allocation6 + $0x1c0] sm:$0xff]
    %v332 = vld [vmem:[#allocation6 + $0x1c8] sm:$0xff]
    %v333 = vld [vmem:[#allocation6 + $0x1d0] sm:$0xff]
    %v334 = vld [vmem:[#allocation6 + $0x1d8] sm:$0xff]
    %v335 = vld [vmem:[#allocation6 + $0x1e0] sm:$0xff]
    %v336 = vld [vmem:[#allocation6 + $0x1e8] sm:$0xff]
    %v337 = vld [vmem:[#allocation6 + $0x1f0] sm:$0xff]
    %v338 = vld [vmem:[#allocation6 + $0x1f8] sm:$0xff]
    %v339 = vld [vmem:[#allocation6 + $0x200] sm:$0xff]
    %v340 = vld [vmem:[#allocation6 + $0x208] sm:$0xff]
    %v341 = vld [vmem:[#allocation6 + $0x210] sm:$0xff]
    %v342 = vld [vmem:[#allocation6 + $0x218] sm:$0xff]
    %v343 = vld [vmem:[#allocation6 + $0x220] sm:$0xff]
    %v344 = vld [vmem:[#allocation6 + $0x228] sm:$0xff]
    %v345 = vld [vmem:[#allocation6 + $0x230] sm:$0xff]
    %v346 = vld [vmem:[#allocation6 + $0x238] sm:$0xff]
    %v347 = vld [vmem:[#allocation6 + $0x240] sm:$0xff]
    %v348 = vld [vmem:[#allocation6 + $0x248] sm:$0xff]
    %v349 = vld [vmem:[#allocation6 + $0x250] sm:$0xff]
    %v350 = vld [vmem:[#allocation6 + $0x258] sm:$0xff]
    %v351 = vld [vmem:[#allocation6 + $0x260] sm:$0xff]
    %v352 = vld [vmem:[#allocation6 + $0x268] sm:$0xff]
    %v353 = vld [vmem:[#allocation6 + $0x270] sm:$0xff]
    %v354 = vld [vmem:[#allocation6 + $0x278] sm:$0xff]
    %v355 = vld [vmem:[#allocation6 + $0x280] sm:$0xff]
    %v356 = vld [vmem:[#allocation6 + $0x288] sm:$0xff]
    %v357 = vld [vmem:[#allocation6 + $0x290] sm:$0xff]
    %v358 = vld [vmem:[#allocation6 + $0x298] sm:$0xff]
    %v359 = vld [vmem:[#allocation6 + $0x2a0] sm:$0xff]
    %v360 = vld [vmem:[#allocation6 + $0x2a8] sm:$0xff]
    %v361 = vld [vmem:[#allocation6 + $0x2b0] sm:$0xff]
    %v362 = vld [vmem:[#allocation6 + $0x2b8] sm:$0xff]
    %v363 = vld [vmem:[#allocation6 + $0x2c0] sm:$0xff]
    %v364 = vld [vmem:[#allocation6 + $0x2c8] sm:$0xff]
    %v365 = vld [vmem:[#allocation6 + $0x2d0] sm:$0xff]
    %v366 = vld [vmem:[#allocation6 + $0x2d8] sm:$0xff]
    %v367 = vld [vmem:[#allocation6 + $0x2e0] sm:$0xff]
    %v368 = vld [vmem:[#allocation6 + $0x2e8] sm:$0xff]
    %v369 = vld [vmem:[#allocation6 + $0x2f0] sm:$0xff]
    %v370 = vld [vmem:[#allocation6 + $0x2f8] sm:$0xff]
    %v371 = vld [vmem:[#allocation6 + $0x300] sm:$0xff]
    %v372 = vld [vmem:[#allocation6 + $0x308] sm:$0xff]
    %v373 = vld [vmem:[#allocation6 + $0x310] sm:$0xff]
    %v374 = vld [vmem:[#allocation6 + $0x318] sm:$0xff]
    %v375 = vld [vmem:[#allocation6 + $0x320] sm:$0xff]
    %v376 = vld [vmem:[#allocation6 + $0x328] sm:$0xff]
    %v377 = vld [vmem:[#allocation6 + $0x330] sm:$0xff]
    %v378 = vld [vmem:[#allocation6 + $0x338] sm:$0xff]
    %v379 = vld [vmem:[#allocation6 + $0x340] sm:$0xff]
    %v380 = vld [vmem:[#allocation6 + $0x348] sm:$0xff]
    %v381 = vld [vmem:[#allocation6 + $0x350] sm:$0xff]
    %v382 = vld [vmem:[#allocation6 + $0x358] sm:$0xff]
    %v383 = vld [vmem:[#allocation6 + $0x360] sm:$0xff]
    %v384 = vld [vmem:[#allocation6 + $0x368] sm:$0xff]
    %v385 = vld [vmem:[#allocation6 + $0x370] sm:$0xff]
    %v386 = vld [vmem:[#allocation6 + $0x378] sm:$0xff]
    %v387 = vld [vmem:[#allocation6 + $0x380] sm:$0xff]
    %v388 = vld [vmem:[#allocation6 + $0x388] sm:$0xff]
    %v389 = vld [vmem:[#allocation6 + $0x390] sm:$0xff]
    %v390 = vld [vmem:[#allocation6 + $0x398] sm:$0xff]
    %v391 = vld [vmem:[#allocation6 + $0x3a0] sm:$0xff]
    %v392 = vld [vmem:[#allocation6 + $0x3a8] sm:$0xff]
    %v393 = vld [vmem:[#allocation6 + $0x3b0] sm:$0xff]
    %v394 = vld [vmem:[#allocation6 + $0x3b8] sm:$0xff]
    %v395 = vld [vmem:[#allocation6 + $0x3c0] sm:$0xff]
    %v396 = vld [vmem:[#allocation6 + $0x3c8] sm:$0xff]
    %v397 = vld [vmem:[#allocation6 + $0x3d0] sm:$0xff]
    %v398 = vld [vmem:[#allocation6 + $0x3d8] sm:$0xff]
    %v399 = vld [vmem:[#allocation6 + $0x3e0] sm:$0xff]
    %v400 = vld [vmem:[#allocation6 + $0x3e8] sm:$0xff]
    %v401 = vld [vmem:[#allocation6 + $0x3f0] sm:$0xff]
    %v402 = vld [vmem:[#allocation6 + $0x3f8] sm:$0xff]
    %v403 = vld [vmem:[#allocation6 + $0x400] sm:$0xff]
    %v404 = vld [vmem:[#allocation6 + $0x408] sm:$0xff]
    %v405 = vld [vmem:[#allocation6 + $0x410] sm:$0xff]
    %v406 = vld [vmem:[#allocation6 + $0x418] sm:$0xff]
    %v407 = vld [vmem:[#allocation6 + $0x420] sm:$0xff]
    %v408 = vld [vmem:[#allocation6 + $0x428] sm:$0xff]
    %v409 = vld [vmem:[#allocation6 + $0x430] sm:$0xff]
    %v410 = vld [vmem:[#allocation6 + $0x438] sm:$0xff]
    %v411 = vld [vmem:[#allocation6 + $0x440] sm:$0xff]
    %v412 = vld [vmem:[#allocation6 + $0x448] sm:$0xff]
    %v413 = vld [vmem:[#allocation6 + $0x450] sm:$0xff]
    %v414 = vld [vmem:[#allocation6 + $0x458] sm:$0xff]
    %v415 = vld [vmem:[#allocation6 + $0x460] sm:$0xff]
    %v416 = vld [vmem:[#allocation6 + $0x468] sm:$0xff]
    %v417 = vld [vmem:[#allocation6 + $0x470] sm:$0xff]
    %v418 = vld [vmem:[#allocation6 + $0x478] sm:$0xff]
    %v419 = vld [vmem:[#allocation6 + $0x480] sm:$0xff]
    %v420 = vld [vmem:[#allocation6 + $0x488] sm:$0xff]
    %v421 = vld [vmem:[#allocation6 + $0x490] sm:$0xff]
    %v422 = vld [vmem:[#allocation6 + $0x498] sm:$0xff]
    %v423 = vld [vmem:[#allocation6 + $0x4a0] sm:$0xff]
    %v424 = vld [vmem:[#allocation6 + $0x4a8] sm:$0xff]
    %v425 = vld [vmem:[#allocation6 + $0x4b0] sm:$0xff]
    %v426 = vld [vmem:[#allocation6 + $0x4b8] sm:$0xff]
    %v427 = vld [vmem:[#allocation6 + $0x4c0] sm:$0xff]
    %v428 = vld [vmem:[#allocation6 + $0x4c8] sm:$0xff]
    %v429 = vld [vmem:[#allocation6 + $0x4d0] sm:$0xff]
    %v430 = vld [vmem:[#allocation6 + $0x4d8] sm:$0xff]
    %v431 = vld [vmem:[#allocation6 + $0x4e0] sm:$0xff]
    %v432 = vld [vmem:[#allocation6 + $0x4e8] sm:$0xff]
    %v433 = vld [vmem:[#allocation6 + $0x4f0] sm:$0xff]
    %v434 = vld [vmem:[#allocation6 + $0x4f8] sm:$0xff]
    %v435 = vld [vmem:[#allocation6 + $0x500] sm:$0xff]
    %v436 = vld [vmem:[#allocation6 + $0x508] sm:$0xff]
    %v437 = vld [vmem:[#allocation6 + $0x510] sm:$0xff]
    %v438 = vld [vmem:[#allocation6 + $0x518] sm:$0xff]
    %v439 = vld [vmem:[#allocation6 + $0x520] sm:$0xff]
    %v440 = vld [vmem:[#allocation6 + $0x528] sm:$0xff]
    %v441 = vld [vmem:[#allocation6 + $0x530] sm:$0xff]
    %v442 = vld [vmem:[#allocation6 + $0x538] sm:$0xff]
    %v443 = vld [vmem:[#allocation6 + $0x540] sm:$0xff]
    %v444 = vld [vmem:[#allocation6 + $0x548] sm:$0xff]
    %v445 = vld [vmem:[#allocation6 + $0x550] sm:$0xff]
    %v446 = vld [vmem:[#allocation6 + $0x558] sm:$0xff]
    %v447 = vld [vmem:[#allocation6 + $0x560] sm:$0xff]
    %v448 = vld [vmem:[#allocation6 + $0x568] sm:$0xff]
    %v449 = vld [vmem:[#allocation6 + $0x570] sm:$0xff]
    %v450 = vld [vmem:[#allocation6 + $0x578] sm:$0xff]
    %v451 = vld [vmem:[#allocation6 + $0x580] sm:$0xff]
    %v452 = vld [vmem:[#allocation6 + $0x588] sm:$0xff]
    %v453 = vld [vmem:[#allocation6 + $0x590] sm:$0xff]
    %v454 = vld [vmem:[#allocation6 + $0x598] sm:$0xff]
    %v455 = vld [vmem:[#allocation6 + $0x5a0] sm:$0xff]
    %v456 = vld [vmem:[#allocation6 + $0x5a8] sm:$0xff]
    %v457 = vld [vmem:[#allocation6 + $0x5b0] sm:$0xff]
    %v458 = vld [vmem:[#allocation6 + $0x5b8] sm:$0xff]
    %v459 = vld [vmem:[#allocation6 + $0x5c0] sm:$0xff]
    %v460 = vld [vmem:[#allocation6 + $0x5c8] sm:$0xff]
    %v461 = vld [vmem:[#allocation6 + $0x5d0] sm:$0xff]
    %v462 = vld [vmem:[#allocation6 + $0x5d8] sm:$0xff]
    %v463 = vld [vmem:[#allocation6 + $0x5e0] sm:$0xff]
    %v464 = vld [vmem:[#allocation6 + $0x5e8] sm:$0xff]
    %v465 = vld [vmem:[#allocation6 + $0x5f0] sm:$0xff]
    %v466 = vld [vmem:[#allocation6 + $0x5f8] sm:$0xff]
    %v467 = vld [vmem:[#allocation6 + $0x600] sm:$0xff]
    %v468 = vld [vmem:[#allocation6 + $0x608] sm:$0xff]
    %v469 = vld [vmem:[#allocation6 + $0x610] sm:$0xff]
    %v470 = vld [vmem:[#allocation6 + $0x618] sm:$0xff]
    %v471 = vld [vmem:[#allocation8] sm:$0xf]
    %v473 = vlaneseq
    %v474 = vshrl.u32 %v473, 7
    %v475 = vsub.s32 0, %v474
    %v476 = vrot.slane %v471, %v475
    %v477 = vlaneseq
    %v478 = vshrl.u32 %v477, 7
    %v479 = vsub.s32 1, %v478
    %v480 = vrot.slane %v471, %v479
    %v481 = vlaneseq
    %v482 = vshrl.u32 %v481, 7
    %v483 = vsub.s32 2, %v482
    %v484 = vrot.slane %v471, %v483
    %v485 = vlaneseq
    %v486 = vshrl.u32 %v485, 7
    %v487 = vsub.s32 3, %v486
    %v488 = vrot.slane %v471, %v487
    %v689 = vunpack.c.l.b16 %v275
    %v690 = vunpack.c.h.b16 %v275
    %v691 = vunpack.c.l.b16 %v276
    %v692 = vunpack.c.h.b16 %v276
    %v693 = vunpack.c.l.b16 %v277
    %v694 = vunpack.c.h.b16 %v277
    %v695 = vunpack.c.l.b16 %v278
    %v696 = vunpack.c.h.b16 %v278
    %v697 = vunpack.c.l.b16 %v279
    %v698 = vunpack.c.h.b16 %v279
    %v699 = vunpack.c.l.b16 %v280
    %v700 = vunpack.c.h.b16 %v280
    %v701 = vunpack.c.l.b16 %v281
    %v702 = vunpack.c.h.b16 %v281
    %v703 = vunpack.c.l.b16 %v282
    %v704 = vunpack.c.h.b16 %v282
    %v705 = vunpack.c.l.b16 %v283
    %v706 = vunpack.c.h.b16 %v283
    %v707 = vunpack.c.l.b16 %v284
    %v708 = vunpack.c.h.b16 %v284
    %v709 = vunpack.c.l.b16 %v285
    %v710 = vunpack.c.h.b16 %v285
    %v711 = vunpack.c.l.b16 %v286
    %v712 = vunpack.c.h.b16 %v286
    %v713 = vunpack.c.l.b16 %v287
    %v714 = vunpack.c.h.b16 %v287
    %v715 = vunpack.c.l.b16 %v288
    %v716 = vunpack.c.h.b16 %v288
    %v717 = vunpack.c.l.b16 %v289
    %v718 = vunpack.c.h.b16 %v289
    %v719 = vunpack.c.l.b16 %v290
    %v720 = vunpack.c.h.b16 %v290
    %v721 = vunpack.c.l.b16 %v291
    %v722 = vunpack.c.h.b16 %v291
    %v723 = vunpack.c.l.b16 %v292
    %v724 = vunpack.c.h.b16 %v292
    %v725 = vunpack.c.l.b16 %v293
    %v726 = vunpack.c.h.b16 %v293
    %v727 = vunpack.c.l.b16 %v294
    %v728 = vunpack.c.h.b16 %v294
    %v729 = vunpack.c.l.b16 %v295
    %v730 = vunpack.c.h.b16 %v295
    %v731 = vunpack.c.l.b16 %v296
    %v732 = vunpack.c.h.b16 %v296
    %v733 = vunpack.c.l.b16 %v297
    %v734 = vunpack.c.h.b16 %v297
    %v735 = vunpack.c.l.b16 %v298
    %v736 = vunpack.c.h.b16 %v298
    %v737 = vunpack.c.l.b16 %v299
    %v738 = vunpack.c.h.b16 %v299
    %v739 = vunpack.c.l.b16 %v300
    %v740 = vunpack.c.h.b16 %v300
    %v741 = vunpack.c.l.b16 %v301
    %v742 = vunpack.c.h.b16 %v301
    %v743 = vunpack.c.l.b16 %v302
    %v744 = vunpack.c.h.b16 %v302
    %v745 = vunpack.c.l.b16 %v303
    %v746 = vunpack.c.h.b16 %v303
    %v747 = vunpack.c.l.b16 %v304
    %v748 = vunpack.c.h.b16 %v304
    %v749 = vunpack.c.l.b16 %v305
    %v750 = vunpack.c.h.b16 %v305
    %v751 = vunpack.c.l.b16 %v306
    %v752 = vunpack.c.h.b16 %v306
    %v753 = vunpack.c.l.b16 %v307
    %v754 = vunpack.c.h.b16 %v307
    %v755 = vunpack.c.l.b16 %v308
    %v756 = vunpack.c.h.b16 %v308
    %v757 = vunpack.c.l.b16 %v309
    %v758 = vunpack.c.h.b16 %v309
    %v759 = vunpack.c.l.b16 %v310
    %v760 = vunpack.c.h.b16 %v310
    %v761 = vunpack.c.l.b16 %v311
    %v762 = vunpack.c.h.b16 %v311
    %v763 = vunpack.c.l.b16 %v312
    %v764 = vunpack.c.h.b16 %v312
    %v765 = vunpack.c.l.b16 %v313
    %v766 = vunpack.c.h.b16 %v313
    %v767 = vunpack.c.l.b16 %v314
    %v768 = vunpack.c.h.b16 %v314
    %v769 = vunpack.c.l.b16 %v315
    %v770 = vunpack.c.h.b16 %v315
    %v771 = vunpack.c.l.b16 %v316
    %v772 = vunpack.c.h.b16 %v316
    %v773 = vunpack.c.l.b16 %v317
    %v774 = vunpack.c.h.b16 %v317
    %v775 = vunpack.c.l.b16 %v318
    %v776 = vunpack.c.h.b16 %v318
    %v777 = vunpack.c.l.b16 %v319
    %v778 = vunpack.c.h.b16 %v319
    %v779 = vunpack.c.l.b16 %v320
    %v780 = vunpack.c.h.b16 %v320
    %v781 = vunpack.c.l.b16 %v321
    %v782 = vunpack.c.h.b16 %v321
    %v783 = vunpack.c.l.b16 %v322
    %v784 = vunpack.c.h.b16 %v322
    %v785 = vunpack.c.l.b16 %v323
    %v786 = vunpack.c.h.b16 %v323
    %v787 = vunpack.c.l.b16 %v324
    %v788 = vunpack.c.h.b16 %v324
    %v789 = vunpack.c.l.b16 %v325
    %v790 = vunpack.c.h.b16 %v325
    %v791 = vunpack.c.l.b16 %v326
    %v792 = vunpack.c.h.b16 %v326
    %v793 = vunpack.c.l.b16 %v327
    %v794 = vunpack.c.h.b16 %v327
    %v795 = vunpack.c.l.b16 %v328
    %v796 = vunpack.c.h.b16 %v328
    %v797 = vunpack.c.l.b16 %v329
    %v798 = vunpack.c.h.b16 %v329
    %v799 = vunpack.c.l.b16 %v330
    %v800 = vunpack.c.h.b16 %v330
    %v801 = vunpack.c.l.b16 %v331
    %v802 = vunpack.c.h.b16 %v331
    %v803 = vunpack.c.l.b16 %v332
    %v804 = vunpack.c.h.b16 %v332
    %v805 = vunpack.c.l.b16 %v333
    %v806 = vunpack.c.h.b16 %v333
    %v807 = vunpack.c.l.b16 %v334
    %v808 = vunpack.c.h.b16 %v334
    %v809 = vunpack.c.l.b16 %v335
    %v810 = vunpack.c.h.b16 %v335
    %v811 = vunpack.c.l.b16 %v336
    %v812 = vunpack.c.h.b16 %v336
    %v813 = vunpack.c.l.b16 %v337
    %v814 = vunpack.c.h.b16 %v337
    %v815 = vunpack.c.l.b16 %v338
    %v816 = vunpack.c.h.b16 %v338
    %v817 = vunpack.c.l.b16 %v339
    %v818 = vunpack.c.h.b16 %v339
    %v819 = vunpack.c.l.b16 %v340
    %v820 = vunpack.c.h.b16 %v340
    %v821 = vunpack.c.l.b16 %v341
    %v822 = vunpack.c.h.b16 %v341
    %v823 = vunpack.c.l.b16 %v342
    %v824 = vunpack.c.h.b16 %v342
    %v825 = vunpack.c.l.b16 %v343
    %v826 = vunpack.c.h.b16 %v343
    %v827 = vunpack.c.l.b16 %v344
    %v828 = vunpack.c.h.b16 %v344
    %v829 = vunpack.c.l.b16 %v345
    %v830 = vunpack.c.h.b16 %v345
    %v831 = vunpack.c.l.b16 %v346
    %v832 = vunpack.c.h.b16 %v346
    %v833 = vunpack.c.l.b16 %v347
    %v834 = vunpack.c.h.b16 %v347
    %v835 = vunpack.c.l.b16 %v348
    %v836 = vunpack.c.h.b16 %v348
    %v837 = vunpack.c.l.b16 %v349
    %v838 = vunpack.c.h.b16 %v349
    %v839 = vunpack.c.l.b16 %v350
    %v840 = vunpack.c.h.b16 %v350
    %v841 = vunpack.c.l.b16 %v351
    %v842 = vunpack.c.h.b16 %v351
    %v843 = vunpack.c.l.b16 %v352
    %v844 = vunpack.c.h.b16 %v352
    %v845 = vunpack.c.l.b16 %v353
    %v846 = vunpack.c.h.b16 %v353
    %v847 = vunpack.c.l.b16 %v354
    %v848 = vunpack.c.h.b16 %v354
    %v849 = vunpack.c.l.b16 %v355
    %v850 = vunpack.c.h.b16 %v355
    %v851 = vunpack.c.l.b16 %v356
    %v852 = vunpack.c.h.b16 %v356
    %v853 = vunpack.c.l.b16 %v357
    %v854 = vunpack.c.h.b16 %v357
    %v855 = vunpack.c.l.b16 %v358
    %v856 = vunpack.c.h.b16 %v358
    %v857 = vunpack.c.l.b16 %v359
    %v858 = vunpack.c.h.b16 %v359
    %v859 = vunpack.c.l.b16 %v360
    %v860 = vunpack.c.h.b16 %v360
    %v861 = vunpack.c.l.b16 %v361
    %v862 = vunpack.c.h.b16 %v361
    %v863 = vunpack.c.l.b16 %v362
    %v864 = vunpack.c.h.b16 %v362
    %v865 = vunpack.c.l.b16 %v363
    %v866 = vunpack.c.h.b16 %v363
    %v867 = vunpack.c.l.b16 %v364
    %v868 = vunpack.c.h.b16 %v364
    %v869 = vunpack.c.l.b16 %v365
    %v870 = vunpack.c.h.b16 %v365
    %v871 = vunpack.c.l.b16 %v366
    %v872 = vunpack.c.h.b16 %v366
    %v873 = vunpack.c.l.b16 %v367
    %v874 = vunpack.c.h.b16 %v367
    %v875 = vunpack.c.l.b16 %v368
    %v876 = vunpack.c.h.b16 %v368
    %v877 = vunpack.c.l.b16 %v369
    %v878 = vunpack.c.h.b16 %v369
    %v879 = vunpack.c.l.b16 %v370
    %v880 = vunpack.c.h.b16 %v370
    %v881 = vunpack.c.l.b16 %v371
    %v882 = vunpack.c.h.b16 %v371
    %v883 = vunpack.c.l.b16 %v372
    %v884 = vunpack.c.h.b16 %v372
    %v885 = vunpack.c.l.b16 %v373
    %v886 = vunpack.c.h.b16 %v373
    %v887 = vunpack.c.l.b16 %v374
    %v888 = vunpack.c.h.b16 %v374
    %v889 = vunpack.c.l.b16 %v375
    %v890 = vunpack.c.h.b16 %v375
    %v891 = vunpack.c.l.b16 %v376
    %v892 = vunpack.c.h.b16 %v376
    %v893 = vunpack.c.l.b16 %v377
    %v894 = vunpack.c.h.b16 %v377
    %v895 = vunpack.c.l.b16 %v378
    %v896 = vunpack.c.h.b16 %v378
    %v897 = vunpack.c.l.b16 %v379
    %v898 = vunpack.c.h.b16 %v379
    %v899 = vunpack.c.l.b16 %v380
    %v900 = vunpack.c.h.b16 %v380
    %v901 = vunpack.c.l.b16 %v381
    %v902 = vunpack.c.h.b16 %v381
    %v903 = vunpack.c.l.b16 %v382
    %v904 = vunpack.c.h.b16 %v382
    %v905 = vunpack.c.l.b16 %v383
    %v906 = vunpack.c.h.b16 %v383
    %v907 = vunpack.c.l.b16 %v384
    %v908 = vunpack.c.h.b16 %v384
    %v909 = vunpack.c.l.b16 %v385
    %v910 = vunpack.c.h.b16 %v385
    %v911 = vunpack.c.l.b16 %v386
    %v912 = vunpack.c.h.b16 %v386
    %v913 = vunpack.c.l.b16 %v387
    %v914 = vunpack.c.h.b16 %v387
    %v915 = vunpack.c.l.b16 %v388
    %v916 = vunpack.c.h.b16 %v388
    %v917 = vunpack.c.l.b16 %v389
    %v918 = vunpack.c.h.b16 %v389
    %v919 = vunpack.c.l.b16 %v390
    %v920 = vunpack.c.h.b16 %v390
    %v921 = vunpack.c.l.b16 %v391
    %v922 = vunpack.c.h.b16 %v391
    %v923 = vunpack.c.l.b16 %v392
    %v924 = vunpack.c.h.b16 %v392
    %v925 = vunpack.c.l.b16 %v393
    %v926 = vunpack.c.h.b16 %v393
    %v927 = vunpack.c.l.b16 %v394
    %v928 = vunpack.c.h.b16 %v394
    %v929 = vunpack.c.l.b16 %v395
    %v930 = vunpack.c.h.b16 %v395
    %v931 = vunpack.c.l.b16 %v396
    %v932 = vunpack.c.h.b16 %v396
    %v933 = vunpack.c.l.b16 %v397
    %v934 = vunpack.c.h.b16 %v397
    %v935 = vunpack.c.l.b16 %v398
    %v936 = vunpack.c.h.b16 %v398
    %v937 = vunpack.c.l.b16 %v399
    %v938 = vunpack.c.h.b16 %v399
    %v939 = vunpack.c.l.b16 %v400
    %v940 = vunpack.c.h.b16 %v400
    %v941 = vunpack.c.l.b16 %v401
    %v942 = vunpack.c.h.b16 %v401
    %v943 = vunpack.c.l.b16 %v402
    %v944 = vunpack.c.h.b16 %v402
    %v945 = vunpack.c.l.b16 %v403
    %v946 = vunpack.c.h.b16 %v403
    %v947 = vunpack.c.l.b16 %v404
    %v948 = vunpack.c.h.b16 %v404
    %v949 = vunpack.c.l.b16 %v405
    %v950 = vunpack.c.h.b16 %v405
    %v951 = vunpack.c.l.b16 %v406
    %v952 = vunpack.c.h.b16 %v406
    %v953 = vunpack.c.l.b16 %v407
    %v954 = vunpack.c.h.b16 %v407
    %v955 = vunpack.c.l.b16 %v408
    %v956 = vunpack.c.h.b16 %v408
    %v957 = vunpack.c.l.b16 %v409
    %v958 = vunpack.c.h.b16 %v409
    %v959 = vunpack.c.l.b16 %v410
    %v960 = vunpack.c.h.b16 %v410
    %v961 = vunpack.c.l.b16 %v411
    %v962 = vunpack.c.h.b16 %v411
    %v963 = vunpack.c.l.b16 %v412
    %v964 = vunpack.c.h.b16 %v412
    %v965 = vunpack.c.l.b16 %v413
    %v966 = vunpack.c.h.b16 %v413
    %v967 = vunpack.c.l.b16 %v414
    %v968 = vunpack.c.h.b16 %v414
    %v969 = vunpack.c.l.b16 %v415
    %v970 = vunpack.c.h.b16 %v415
    %v971 = vunpack.c.l.b16 %v416
    %v972 = vunpack.c.h.b16 %v416
    %v973 = vunpack.c.l.b16 %v417
    %v974 = vunpack.c.h.b16 %v417
    %v975 = vunpack.c.l.b16 %v418
    %v976 = vunpack.c.h.b16 %v418
    %v977 = vunpack.c.l.b16 %v419
    %v978 = vunpack.c.h.b16 %v419
    %v979 = vunpack.c.l.b16 %v420
    %v980 = vunpack.c.h.b16 %v420
    %v981 = vunpack.c.l.b16 %v421
    %v982 = vunpack.c.h.b16 %v421
    %v983 = vunpack.c.l.b16 %v422
    %v984 = vunpack.c.h.b16 %v422
    %v985 = vunpack.c.l.b16 %v423
    %v986 = vunpack.c.h.b16 %v423
    %v987 = vunpack.c.l.b16 %v424
    %v988 = vunpack.c.h.b16 %v424
    %v989 = vunpack.c.l.b16 %v425
    %v990 = vunpack.c.h.b16 %v425
    %v991 = vunpack.c.l.b16 %v426
    %v992 = vunpack.c.h.b16 %v426
    %v993 = vunpack.c.l.b16 %v427
    %v994 = vunpack.c.h.b16 %v427
    %v995 = vunpack.c.l.b16 %v428
    %v996 = vunpack.c.h.b16 %v428
    %v997 = vunpack.c.l.b16 %v429
    %v998 = vunpack.c.h.b16 %v429
    %v999 = vunpack.c.l.b16 %v430
    %v1000 = vunpack.c.h.b16 %v430
    %v1001 = vunpack.c.l.b16 %v431
    %v1002 = vunpack.c.h.b16 %v431
    %v1003 = vunpack.c.l.b16 %v432
    %v1004 = vunpack.c.h.b16 %v432
    %v1005 = vunpack.c.l.b16 %v433
    %v1006 = vunpack.c.h.b16 %v433
    %v1007 = vunpack.c.l.b16 %v434
    %v1008 = vunpack.c.h.b16 %v434
    %v1009 = vunpack.c.l.b16 %v435
    %v1010 = vunpack.c.h.b16 %v435
    %v1011 = vunpack.c.l.b16 %v436
    %v1012 = vunpack.c.h.b16 %v436
    %v1013 = vunpack.c.l.b16 %v437
    %v1014 = vunpack.c.h.b16 %v437
    %v1015 = vunpack.c.l.b16 %v438
    %v1016 = vunpack.c.h.b16 %v438
    %v1017 = vunpack.c.l.b16 %v439
    %v1018 = vunpack.c.h.b16 %v439
    %v1019 = vunpack.c.l.b16 %v440
    %v1020 = vunpack.c.h.b16 %v440
    %v1021 = vunpack.c.l.b16 %v441
    %v1022 = vunpack.c.h.b16 %v441
    %v1023 = vunpack.c.l.b16 %v442
    %v1024 = vunpack.c.h.b16 %v442
    %v1025 = vunpack.c.l.b16 %v443
    %v1026 = vunpack.c.h.b16 %v443
    %v1027 = vunpack.c.l.b16 %v444
    %v1028 = vunpack.c.h.b16 %v444
    %v1029 = vunpack.c.l.b16 %v445
    %v1030 = vunpack.c.h.b16 %v445
    %v1031 = vunpack.c.l.b16 %v446
    %v1032 = vunpack.c.h.b16 %v446
    %v1033 = vunpack.c.l.b16 %v447
    %v1034 = vunpack.c.h.b16 %v447
    %v1035 = vunpack.c.l.b16 %v448
    %v1036 = vunpack.c.h.b16 %v448
    %v1037 = vunpack.c.l.b16 %v449
    %v1038 = vunpack.c.h.b16 %v449
    %v1039 = vunpack.c.l.b16 %v450
    %v1040 = vunpack.c.h.b16 %v450
    %v1041 = vunpack.c.l.b16 %v451
    %v1042 = vunpack.c.h.b16 %v451
    %v1043 = vunpack.c.l.b16 %v452
    %v1044 = vunpack.c.h.b16 %v452
    %v1045 = vunpack.c.l.b16 %v453
    %v1046 = vunpack.c.h.b16 %v453
    %v1047 = vunpack.c.l.b16 %v454
    %v1048 = vunpack.c.h.b16 %v454
    %v1049 = vunpack.c.l.b16 %v455
    %v1050 = vunpack.c.h.b16 %v455
    %v1051 = vunpack.c.l.b16 %v456
    %v1052 = vunpack.c.h.b16 %v456
    %v1053 = vunpack.c.l.b16 %v457
    %v1054 = vunpack.c.h.b16 %v457
    %v1055 = vunpack.c.l.b16 %v458
    %v1056 = vunpack.c.h.b16 %v458
    %v1057 = vunpack.c.l.b16 %v459
    %v1058 = vunpack.c.h.b16 %v459
    %v1059 = vunpack.c.l.b16 %v460
    %v1060 = vunpack.c.h.b16 %v460
    %v1061 = vunpack.c.l.b16 %v461
    %v1062 = vunpack.c.h.b16 %v461
    %v1063 = vunpack.c.l.b16 %v462
    %v1064 = vunpack.c.h.b16 %v462
    %v1065 = vunpack.c.l.b16 %v463
    %v1066 = vunpack.c.h.b16 %v463
    %v1067 = vunpack.c.l.b16 %v464
    %v1068 = vunpack.c.h.b16 %v464
    %v1069 = vunpack.c.l.b16 %v465
    %v1070 = vunpack.c.h.b16 %v465
    %v1071 = vunpack.c.l.b16 %v466
    %v1072 = vunpack.c.h.b16 %v466
    %v1073 = vunpack.c.l.b16 %v467
    %v1074 = vunpack.c.h.b16 %v467
    %v1075 = vunpack.c.l.b16 %v468
    %v1076 = vunpack.c.h.b16 %v468
    %v1077 = vunpack.c.l.b16 %v469
    %v1078 = vunpack.c.h.b16 %v469
    %v1079 = vunpack.c.l.b16 %v470
    %v1080 = vunpack.c.h.b16 %v470
    %v1081 = vpack.c.b16 %v693, %v689
    %v1082 = vpack.c.b16 %v694, %v690
    %v1083 = vpack.c.b16 %v695, %v691
    %v1084 = vpack.c.b16 %v696, %v692
    %v1085 = vpack.c.b16 %v701, %v697
    %v1086 = vpack.c.b16 %v702, %v698
    %v1087 = vpack.c.b16 %v703, %v699
    %v1088 = vpack.c.b16 %v704, %v700
    %v1089 = vpack.c.b16 %v709, %v705
    %v1090 = vpack.c.b16 %v710, %v706
    %v1091 = vpack.c.b16 %v711, %v707
    %v1092 = vpack.c.b16 %v712, %v708
    %v1093 = vpack.c.b16 %v717, %v713
    %v1094 = vpack.c.b16 %v718, %v714
    %v1095 = vpack.c.b16 %v719, %v715
    %v1096 = vpack.c.b16 %v720, %v716
    %v1097 = vpack.c.b16 %v725, %v721
    %v1098 = vpack.c.b16 %v726, %v722
    %v1099 = vpack.c.b16 %v727, %v723
    %v1100 = vpack.c.b16 %v728, %v724
    %v1101 = vpack.c.b16 %v733, %v729
    %v1102 = vpack.c.b16 %v734, %v730
    %v1103 = vpack.c.b16 %v735, %v731
    %v1104 = vpack.c.b16 %v736, %v732
    %v1105 = vpack.c.b16 %v741, %v737
    %v1106 = vpack.c.b16 %v742, %v738
    %v1107 = vpack.c.b16 %v743, %v739
    %v1108 = vpack.c.b16 %v744, %v740
    %v1109 = vpack.c.b16 %v749, %v745
    %v1110 = vpack.c.b16 %v750, %v746
    %v1111 = vpack.c.b16 %v751, %v747
    %v1112 = vpack.c.b16 %v752, %v748
    %v1113 = vpack.c.b16 %v757, %v753
    %v1114 = vpack.c.b16 %v758, %v754
    %v1115 = vpack.c.b16 %v759, %v755
    %v1116 = vpack.c.b16 %v760, %v756
    %v1117 = vpack.c.b16 %v765, %v761
    %v1118 = vpack.c.b16 %v766, %v762
    %v1119 = vpack.c.b16 %v767, %v763
    %v1120 = vpack.c.b16 %v768, %v764
    %v1121 = vpack.c.b16 %v773, %v769
    %v1122 = vpack.c.b16 %v774, %v770
    %v1123 = vpack.c.b16 %v775, %v771
    %v1124 = vpack.c.b16 %v776, %v772
    %v1125 = vpack.c.b16 %v781, %v777
    %v1126 = vpack.c.b16 %v782, %v778
    %v1127 = vpack.c.b16 %v783, %v779
    %v1128 = vpack.c.b16 %v784, %v780
    %v1129 = vpack.c.b16 %v789, %v785
    %v1130 = vpack.c.b16 %v790, %v786
    %v1131 = vpack.c.b16 %v791, %v787
    %v1132 = vpack.c.b16 %v792, %v788
    %v1133 = vpack.c.b16 %v797, %v793
    %v1134 = vpack.c.b16 %v798, %v794
    %v1135 = vpack.c.b16 %v799, %v795
    %v1136 = vpack.c.b16 %v800, %v796
    %v1137 = vpack.c.b16 %v805, %v801
    %v1138 = vpack.c.b16 %v806, %v802
    %v1139 = vpack.c.b16 %v807, %v803
    %v1140 = vpack.c.b16 %v808, %v804
    %v1141 = vpack.c.b16 %v813, %v809
    %v1142 = vpack.c.b16 %v814, %v810
    %v1143 = vpack.c.b16 %v815, %v811
    %v1144 = vpack.c.b16 %v816, %v812
    %v1145 = vpack.c.b16 %v821, %v817
    %v1146 = vpack.c.b16 %v822, %v818
    %v1147 = vpack.c.b16 %v823, %v819
    %v1148 = vpack.c.b16 %v824, %v820
    %v1149 = vpack.c.b16 %v829, %v825
    %v1150 = vpack.c.b16 %v830, %v826
    %v1151 = vpack.c.b16 %v831, %v827
    %v1152 = vpack.c.b16 %v832, %v828
    %v1153 = vpack.c.b16 %v837, %v833
    %v1154 = vpack.c.b16 %v838, %v834
    %v1155 = vpack.c.b16 %v839, %v835
    %v1156 = vpack.c.b16 %v840, %v836
    %v1157 = vpack.c.b16 %v845, %v841
    %v1158 = vpack.c.b16 %v846, %v842
    %v1159 = vpack.c.b16 %v847, %v843
    %v1160 = vpack.c.b16 %v848, %v844
    %v1161 = vpack.c.b16 %v853, %v849
    %v1162 = vpack.c.b16 %v854, %v850
    %v1163 = vpack.c.b16 %v855, %v851
    %v1164 = vpack.c.b16 %v856, %v852
    %v1165 = vpack.c.b16 %v861, %v857
    %v1166 = vpack.c.b16 %v862, %v858
    %v1167 = vpack.c.b16 %v863, %v859
    %v1168 = vpack.c.b16 %v864, %v860
    %v1169 = vpack.c.b16 %v869, %v865
    %v1170 = vpack.c.b16 %v870, %v866
    %v1171 = vpack.c.b16 %v871, %v867
    %v1172 = vpack.c.b16 %v872, %v868
    %v1173 = vpack.c.b16 %v877, %v873
    %v1174 = vpack.c.b16 %v878, %v874
    %v1175 = vpack.c.b16 %v879, %v875
    %v1176 = vpack.c.b16 %v880, %v876
    %v1177 = vpack.c.b16 %v885, %v881
    %v1178 = vpack.c.b16 %v886, %v882
    %v1179 = vpack.c.b16 %v887, %v883
    %v1180 = vpack.c.b16 %v888, %v884
    %v1181 = vpack.c.b16 %v893, %v889
    %v1182 = vpack.c.b16 %v894, %v890
    %v1183 = vpack.c.b16 %v895, %v891
    %v1184 = vpack.c.b16 %v896, %v892
    %v1185 = vpack.c.b16 %v901, %v897
    %v1186 = vpack.c.b16 %v902, %v898
    %v1187 = vpack.c.b16 %v903, %v899
    %v1188 = vpack.c.b16 %v904, %v900
    %v1189 = vpack.c.b16 %v909, %v905
    %v1190 = vpack.c.b16 %v910, %v906
    %v1191 = vpack.c.b16 %v911, %v907
    %v1192 = vpack.c.b16 %v912, %v908
    %v1193 = vpack.c.b16 %v917, %v913
    %v1194 = vpack.c.b16 %v918, %v914
    %v1195 = vpack.c.b16 %v919, %v915
    %v1196 = vpack.c.b16 %v920, %v916
    %v1197 = vpack.c.b16 %v925, %v921
    %v1198 = vpack.c.b16 %v926, %v922
    %v1199 = vpack.c.b16 %v927, %v923
    %v1200 = vpack.c.b16 %v928, %v924
    %v1201 = vpack.c.b16 %v933, %v929
    %v1202 = vpack.c.b16 %v934, %v930
    %v1203 = vpack.c.b16 %v935, %v931
    %v1204 = vpack.c.b16 %v936, %v932
    %v1205 = vpack.c.b16 %v941, %v937
    %v1206 = vpack.c.b16 %v942, %v938
    %v1207 = vpack.c.b16 %v943, %v939
    %v1208 = vpack.c.b16 %v944, %v940
    %v1209 = vpack.c.b16 %v949, %v945
    %v1210 = vpack.c.b16 %v950, %v946
    %v1211 = vpack.c.b16 %v951, %v947
    %v1212 = vpack.c.b16 %v952, %v948
    %v1213 = vpack.c.b16 %v957, %v953
    %v1214 = vpack.c.b16 %v958, %v954
    %v1215 = vpack.c.b16 %v959, %v955
    %v1216 = vpack.c.b16 %v960, %v956
    %v1217 = vpack.c.b16 %v965, %v961
    %v1218 = vpack.c.b16 %v966, %v962
    %v1219 = vpack.c.b16 %v967, %v963
    %v1220 = vpack.c.b16 %v968, %v964
    %v1221 = vpack.c.b16 %v973, %v969
    %v1222 = vpack.c.b16 %v974, %v970
    %v1223 = vpack.c.b16 %v975, %v971
    %v1224 = vpack.c.b16 %v976, %v972
    %v1225 = vpack.c.b16 %v981, %v977
    %v1226 = vpack.c.b16 %v982, %v978
    %v1227 = vpack.c.b16 %v983, %v979
    %v1228 = vpack.c.b16 %v984, %v980
    %v1229 = vpack.c.b16 %v989, %v985
    %v1230 = vpack.c.b16 %v990, %v986
    %v1231 = vpack.c.b16 %v991, %v987
    %v1232 = vpack.c.b16 %v992, %v988
    %v1233 = vpack.c.b16 %v997, %v993
    %v1234 = vpack.c.b16 %v998, %v994
    %v1235 = vpack.c.b16 %v999, %v995
    %v1236 = vpack.c.b16 %v1000, %v996
    %v1237 = vpack.c.b16 %v1005, %v1001
    %v1238 = vpack.c.b16 %v1006, %v1002
    %v1239 = vpack.c.b16 %v1007, %v1003
    %v1240 = vpack.c.b16 %v1008, %v1004
    %v1241 = vpack.c.b16 %v1013, %v1009
    %v1242 = vpack.c.b16 %v1014, %v1010
    %v1243 = vpack.c.b16 %v1015, %v1011
    %v1244 = vpack.c.b16 %v1016, %v1012
    %v1245 = vpack.c.b16 %v1021, %v1017
    %v1246 = vpack.c.b16 %v1022, %v1018
    %v1247 = vpack.c.b16 %v1023, %v1019
    %v1248 = vpack.c.b16 %v1024, %v1020
    %v1249 = vpack.c.b16 %v1029, %v1025
    %v1250 = vpack.c.b16 %v1030, %v1026
    %v1251 = vpack.c.b16 %v1031, %v1027
    %v1252 = vpack.c.b16 %v1032, %v1028
    %v1253 = vpack.c.b16 %v1037, %v1033
    %v1254 = vpack.c.b16 %v1038, %v1034
    %v1255 = vpack.c.b16 %v1039, %v1035
    %v1256 = vpack.c.b16 %v1040, %v1036
    %v1257 = vpack.c.b16 %v1045, %v1041
    %v1258 = vpack.c.b16 %v1046, %v1042
    %v1259 = vpack.c.b16 %v1047, %v1043
    %v1260 = vpack.c.b16 %v1048, %v1044
    %v1261 = vpack.c.b16 %v1053, %v1049
    %v1262 = vpack.c.b16 %v1054, %v1050
    %v1263 = vpack.c.b16 %v1055, %v1051
    %v1264 = vpack.c.b16 %v1056, %v1052
    %v1265 = vpack.c.b16 %v1061, %v1057
    %v1266 = vpack.c.b16 %v1062, %v1058
    %v1267 = vpack.c.b16 %v1063, %v1059
    %v1268 = vpack.c.b16 %v1064, %v1060
    %v1269 = vpack.c.b16 %v1069, %v1065
    %v1270 = vpack.c.b16 %v1070, %v1066
    %v1271 = vpack.c.b16 %v1071, %v1067
    %v1272 = vpack.c.b16 %v1072, %v1068
    %v1273 = vpack.c.b16 %v1077, %v1073
    %v1274 = vpack.c.b16 %v1078, %v1074
    %v1275 = vpack.c.b16 %v1079, %v1075
    %v1276 = vpack.c.b16 %v1080, %v1076
    %vm1473 = vcmask 130048
    %v1475 = vsel %vm1473, %v225, 0
    %v1478 = vsel %vm1473, %v232, 0
    %v1481 = vsel %vm1473, %v239, 0
    %v1484 = vsel %vm1473, %v246, 0
    %v1487 = vsel %vm1473, %v253, 0
    %v1490 = vsel %vm1473, %v260, 0
    %v1493 = vsel %vm1473, %v267, 0
    %v1496 = vsel %vm1473, %v274, 0
    %1498 = vmatprep.subr.bf16.mxu0 %v1082
    %1499 = vmatpush1.bf16.msra.mxu0 %v1081
    %1500 = vmatprep.subr.bf16.mxu0 %v1086
    %1501 = vmatpush1.bf16.msra.mxu0 %v1085
    %1502 = vmatprep.subr.bf16.mxu0 %v1090
    %1503 = vmatpush1.bf16.msra.mxu0 %v1089
    %1504 = vmatprep.subr.bf16.mxu0 %v1094
    %1505 = vmatpush1.bf16.msra.mxu0 %v1093
    %1506 = vmatprep.subr.bf16.mxu0 %v1098
    %1507 = vmatpush1.bf16.msra.mxu0 %v1097
    %1508 = vmatprep.subr.bf16.mxu0 %v1102
    %1509 = vmatpush1.bf16.msra.mxu0 %v1101
    %1510 = vmatprep.subr.bf16.mxu0 %v1106
    %1511 = vmatpush1.bf16.msra.mxu0 %v1105
    %1512 = vmatprep.subr.bf16.mxu0 %v1110
    %1513 = vmatpush1.bf16.msra.mxu0 %v1109
    %1514 = vmatprep.subr.bf16.mxu0 %v1114
    %1515 = vmatpush1.bf16.msra.mxu0 %v1113
    %1516 = vmatprep.subr.bf16.mxu0 %v1118
    %1517 = vmatpush1.bf16.msra.mxu0 %v1117
    %1518 = vmatprep.subr.bf16.mxu0 %v1122
    %1519 = vmatpush1.bf16.msra.mxu0 %v1121
    %1520 = vmatprep.subr.bf16.mxu0 %v1126
    %1521 = vmatpush1.bf16.msra.mxu0 %v1125
    %1522 = vmatprep.subr.bf16.mxu0 %v1130
    %1523 = vmatpush1.bf16.msra.mxu0 %v1129
    %1524 = vmatprep.subr.bf16.mxu0 %v1134
    %1525 = vmatpush1.bf16.msra.mxu0 %v1133
    %1526 = vmatprep.subr.bf16.mxu0 %v1138
    %1527 = vmatpush1.bf16.msra.mxu0 %v1137
    %1528 = vmatprep.subr.bf16.mxu0 %v1142
    %1529 = vmatpush1.bf16.msra.mxu0 %v1141
    %1530 = vmatprep.mubr.bf16.mxu0 %v220
    %1531 = vmatmul.mubr.bf16.gmra.mrb[0].mxu0 %v219
    %v1532 = vpop.f32.mrb[0].mxu0
    %v1533 = vadd.f32 %v476, %v1532
    %v1534 = vpop.f32.mrb[0].mxu0
    %v1535 = vadd.f32 %v480, %v1534
    %v1536 = vpop.f32.mrb[0].mxu0
    %v1537 = vadd.f32 %v476, %v1536
    %v1538 = vpop.f32.mrb[0].mxu0
    %v1539 = vadd.f32 %v480, %v1538
    %1540 = vmatprep.mubr.bf16.mxu0 %v227
    %1541 = vmatmul.mubr.bf16.gmra.mrb[0].mxu0 %v226
    %v1542 = vpop.f32.mrb[0].mxu0
    %v1543 = vadd.f32 %v476, %v1542
    %v1544 = vpop.f32.mrb[0].mxu0
    %v1545 = vadd.f32 %v480, %v1544
    %v1546 = vpop.f32.mrb[0].mxu0
    %v1547 = vadd.f32 %v476, %v1546
    %v1548 = vpop.f32.mrb[0].mxu0
    %v1549 = vadd.f32 %v480, %v1548
    %1550 = vmatprep.mubr.bf16.mxu0 %v234
    %1551 = vmatmul.mubr.bf16.gmra.mrb[0].mxu0 %v233
    %v1552 = vpop.f32.mrb[0].mxu0
    %v1553 = vadd.f32 %v476, %v1552
    %v1554 = vpop.f32.mrb[0].mxu0
    %v1555 = vadd.f32 %v480, %v1554
    %v1556 = vpop.f32.mrb[0].mxu0
    %v1557 = vadd.f32 %v476, %v1556
    %v1558 = vpop.f32.mrb[0].mxu0
    %v1559 = vadd.f32 %v480, %v1558
    %1560 = vmatprep.mubr.bf16.mxu0 %v241
    %1561 = vmatmul.mubr.bf16.gmra.mrb[0].mxu0 %v240
    %v1562 = vpop.f32.mrb[0].mxu0
    %v1563 = vadd.f32 %v476, %v1562
    %v1564 = vpop.f32.mrb[0].mxu0
    %v1565 = vadd.f32 %v480, %v1564
    %v1566 = vpop.f32.mrb[0].mxu0
    %v1567 = vadd.f32 %v476, %v1566
    %v1568 = vpop.f32.mrb[0].mxu0
    %v1569 = vadd.f32 %v480, %v1568
    %1570 = vmatprep.mubr.bf16.mxu0 %v248
    %1571 = vmatmul.mubr.bf16.gmra.mrb[0].mxu0 %v247
    %v1572 = vpop.f32.mrb[0].mxu0
    %v1573 = vadd.f32 %v476, %v1572
    %v1574 = vpop.f32.mrb[0].mxu0
    %v1575 = vadd.f32 %v480, %v1574
    %v1576 = vpop.f32.mrb[0].mxu0
    %v1577 = vadd.f32 %v476, %v1576
    %v1578 = vpop.f32.mrb[0].mxu0
    %v1579 = vadd.f32 %v480, %v1578
    %1580 = vmatprep.mubr.bf16.mxu0 %v255
    %1581 = vmatmul.mubr.bf16.gmra.mrb[0].mxu0 %v254
    %v1582 = vpop.f32.mrb[0].mxu0
    %v1583 = vadd.f32 %v476, %v1582
    %v1584 = vpop.f32.mrb[0].mxu0
    %v1585 = vadd.f32 %v480, %v1584
    %v1586 = vpop.f32.mrb[0].mxu0
    %v1587 = vadd.f32 %v476, %v1586
    %v1588 = vpop.f32.mrb[0].mxu0
    %v1589 = vadd.f32 %v480, %v1588
    %1590 = vmatprep.mubr.bf16.mxu0 %v262
    %1591 = vmatmul.mubr.bf16.gmra.mrb[0].mxu0 %v261
    %v1592 = vpop.f32.mrb[0].mxu0
    %v1593 = vadd.f32 %v476, %v1592
    %v1594 = vpop.f32.mrb[0].mxu0
    %v1595 = vadd.f32 %v480, %v1594
    %v1596 = vpop.f32.mrb[0].mxu0
    %v1597 = vadd.f32 %v476, %v1596
    %v1598 = vpop.f32.mrb[0].mxu0
    %v1599 = vadd.f32 %v480, %v1598
    %1600 = vmatprep.mubr.bf16.mxu0 %v269
    %1601 = vmatmul.mubr.bf16.gmra.mrb[0].mxu0 %v268
    %v1602 = vpop.f32.mrb[0].mxu0
    %v1603 = vadd.f32 %v476, %v1602
    %v1604 = vpop.f32.mrb[0].mxu0
    %v1605 = vadd.f32 %v480, %v1604
    %v1606 = vpop.f32.mrb[0].mxu0
    %v1607 = vadd.f32 %v476, %v1606
    %v1608 = vpop.f32.mrb[0].mxu0
    %v1609 = vadd.f32 %v480, %v1608
    %1610 = vdwg.mxu0
    %1611 = vmatprep.subr.bf16.mxu0 %v1146
    %1612 = vmatpush1.bf16.msra.mxu0 %v1145
    %1613 = vmatprep.subr.bf16.mxu0 %v1150
    %1614 = vmatpush1.bf16.msra.mxu0 %v1149
    %1615 = vmatprep.subr.bf16.mxu0 %v1154
    %1616 = vmatpush1.bf16.msra.mxu0 %v1153
    %1617 = vmatprep.subr.bf16.mxu0 %v1158
    %1618 = vmatpush1.bf16.msra.mxu0 %v1157
    %1619 = vmatprep.subr.bf16.mxu0 %v1162
    %1620 = vmatpush1.bf16.msra.mxu0 %v1161
    %1621 = vmatprep.subr.bf16.mxu0 %v1166
    %1622 = vmatpush1.bf16.msra.mxu0 %v1165
    %1623 = vmatprep.subr.bf16.mxu0 %v1170
    %1624 = vmatpush1.bf16.msra.mxu0 %v1169
    %1625 = vmatprep.subr.bf16.mxu0 %v1174
    %1626 = vmatpush1.bf16.msra.mxu0 %v1173
    %1627 = vmatprep.subr.bf16.mxu0 %v1178
    %1628 = vmatpush1.bf16.msra.mxu0 %v1177
    %1629 = vmatprep.subr.bf16.mxu0 %v1182
    %1630 = vmatpush1.bf16.msra.mxu0 %v1181
    %1631 = vmatprep.subr.bf16.mxu0 %v1186
    %1632 = vmatpush1.bf16.msra.mxu0 %v1185
    %1633 = vmatprep.subr.bf16.mxu0 %v1190
    %1634 = vmatpush1.bf16.msra.mxu0 %v1189
    %1635 = vmatprep.subr.bf16.mxu0 %v1194
    %1636 = vmatpush1.bf16.msra.mxu0 %v1193
    %1637 = vmatprep.subr.bf16.mxu0 %v1198
    %1638 = vmatpush1.bf16.msra.mxu0 %v1197
    %1639 = vmatprep.subr.bf16.mxu0 %v1202
    %1640 = vmatpush1.bf16.msra.mxu0 %v1201
    %1641 = vmatprep.subr.bf16.mxu0 %v1206
    %1642 = vmatpush1.bf16.msra.mxu0 %v1205
    %1643 = vmatprep.mubr.bf16.mxu0 %v222
    %1644 = vmatmul.mubr.bf16.gmra.mrb[0].mxu0 %v221
    %v1645 = vpop.f32.mrb[0].mxu0
    %v1646 = vadd.f32 %v1533, %v1645
    %v1647 = vpop.f32.mrb[0].mxu0
    %v1648 = vadd.f32 %v1535, %v1647
    %v1649 = vpop.f32.mrb[0].mxu0
    %v1650 = vadd.f32 %v1537, %v1649
    %v1651 = vpop.f32.mrb[0].mxu0
    %v1652 = vadd.f32 %v1539, %v1651
    %1653 = vmatprep.mubr.bf16.mxu0 %v229
    %1654 = vmatmul.mubr.bf16.gmra.mrb[0].mxu0 %v228
    %v1655 = vpop.f32.mrb[0].mxu0
    %v1656 = vadd.f32 %v1543, %v1655
    %v1657 = vpop.f32.mrb[0].mxu0
    %v1658 = vadd.f32 %v1545, %v1657
    %v1659 = vpop.f32.mrb[0].mxu0
    %v1660 = vadd.f32 %v1547, %v1659
    %v1661 = vpop.f32.mrb[0].mxu0
    %v1662 = vadd.f32 %v1549, %v1661
    %1663 = vmatprep.mubr.bf16.mxu0 %v236
    %1664 = vmatmul.mubr.bf16.gmra.mrb[0].mxu0 %v235
    %v1665 = vpop.f32.mrb[0].mxu0
    %v1666 = vadd.f32 %v1553, %v1665
    %v1667 = vpop.f32.mrb[0].mxu0
    %v1668 = vadd.f32 %v1555, %v1667
    %v1669 = vpop.f32.mrb[0].mxu0
    %v1670 = vadd.f32 %v1557, %v1669
    %v1671 = vpop.f32.mrb[0].mxu0
    %v1672 = vadd.f32 %v1559, %v1671
    %1673 = vmatprep.mubr.bf16.mxu0 %v243
    %1674 = vmatmul.mubr.bf16.gmra.mrb[0].mxu0 %v242
    %v1675 = vpop.f32.mrb[0].mxu0
    %v1676 = vadd.f32 %v1563, %v1675
    %v1677 = vpop.f32.mrb[0].mxu0
    %v1678 = vadd.f32 %v1565, %v1677
    %v1679 = vpop.f32.mrb[0].mxu0
    %v1680 = vadd.f32 %v1567, %v1679
    %v1681 = vpop.f32.mrb[0].mxu0
    %v1682 = vadd.f32 %v1569, %v1681
    %1683 = vmatprep.mubr.bf16.mxu0 %v250
    %1684 = vmatmul.mubr.bf16.gmra.mrb[0].mxu0 %v249
    %v1685 = vpop.f32.mrb[0].mxu0
    %v1686 = vadd.f32 %v1573, %v1685
    %v1687 = vpop.f32.mrb[0].mxu0
    %v1688 = vadd.f32 %v1575, %v1687
    %v1689 = vpop.f32.mrb[0].mxu0
    %v1690 = vadd.f32 %v1577, %v1689
    %v1691 = vpop.f32.mrb[0].mxu0
    %v1692 = vadd.f32 %v1579, %v1691
    %1693 = vmatprep.mubr.bf16.mxu0 %v257
    %1694 = vmatmul.mubr.bf16.gmra.mrb[0].mxu0 %v256
    %v1695 = vpop.f32.mrb[0].mxu0
    %v1696 = vadd.f32 %v1583, %v1695
    %v1697 = vpop.f32.mrb[0].mxu0
    %v1698 = vadd.f32 %v1585, %v1697
    %v1699 = vpop.f32.mrb[0].mxu0
    %v1700 = vadd.f32 %v1587, %v1699
    %v1701 = vpop.f32.mrb[0].mxu0
    %v1702 = vadd.f32 %v1589, %v1701
    %1703 = vmatprep.mubr.bf16.mxu0 %v264
    %1704 = vmatmul.mubr.bf16.gmra.mrb[0].mxu0 %v263
    %v1705 = vpop.f32.mrb[0].mxu0
    %v1706 = vadd.f32 %v1593, %v1705
    %v1707 = vpop.f32.mrb[0].mxu0
    %v1708 = vadd.f32 %v1595, %v1707
    %v1709 = vpop.f32.mrb[0].mxu0
    %v1710 = vadd.f32 %v1597, %v1709
    %v1711 = vpop.f32.mrb[0].mxu0
    %v1712 = vadd.f32 %v1599, %v1711
    %1713 = vmatprep.mubr.bf16.mxu0 %v271
    %1714 = vmatmul.mubr.bf16.gmra.mrb[0].mxu0 %v270
    %v1715 = vpop.f32.mrb[0].mxu0
    %v1716 = vadd.f32 %v1603, %v1715
    %v1717 = vpop.f32.mrb[0].mxu0
    %v1718 = vadd.f32 %v1605, %v1717
    %v1719 = vpop.f32.mrb[0].mxu0
    %v1720 = vadd.f32 %v1607, %v1719
    %v1721 = vpop.f32.mrb[0].mxu0
    %v1722 = vadd.f32 %v1609, %v1721
    %1723 = vdwg.mxu0
    %1724 = vmatprep.subr.bf16.mxu0 %v1210
    %1725 = vmatpush1.bf16.msra.mxu0 %v1209
    %1726 = vmatprep.subr.bf16.mxu0 %v1214
    %1727 = vmatpush1.bf16.msra.mxu0 %v1213
    %1728 = vmatprep.subr.bf16.mxu0 %v1218
    %1729 = vmatpush1.bf16.msra.mxu0 %v1217
    %1730 = vmatprep.subr.bf16.mxu0 %v1222
    %1731 = vmatpush1.bf16.msra.mxu0 %v1221
    %1732 = vmatprep.subr.bf16.mxu0 %v1226
    %1733 = vmatpush1.bf16.msra.mxu0 %v1225
    %1734 = vmatprep.subr.bf16.mxu0 %v1230
    %1735 = vmatpush1.bf16.msra.mxu0 %v1229
    %1736 = vmatprep.subr.bf16.mxu0 %v1234
    %1737 = vmatpush1.bf16.msra.mxu0 %v1233
    %1738 = vmatprep.subr.bf16.mxu0 %v1238
    %1739 = vmatpush1.bf16.msra.mxu0 %v1237
    %1740 = vmatprep.subr.bf16.mxu0 %v1242
    %1741 = vmatpush1.bf16.msra.mxu0 %v1241
    %1742 = vmatprep.subr.bf16.mxu0 %v1246
    %1743 = vmatpush1.bf16.msra.mxu0 %v1245
    %1744 = vmatprep.subr.bf16.mxu0 %v1250
    %1745 = vmatpush1.bf16.msra.mxu0 %v1249
    %1746 = vmatprep.subr.bf16.mxu0 %v1254
    %1747 = vmatpush1.bf16.msra.mxu0 %v1253
    %1748 = vmatprep.subr.bf16.mxu0 %v1258
    %1749 = vmatpush1.bf16.msra.mxu0 %v1257
    %1750 = vmatprep.subr.bf16.mxu0 %v1262
    %1751 = vmatpush1.bf16.msra.mxu0 %v1261
    %1752 = vmatprep.subr.bf16.mxu0 %v1266
    %1753 = vmatpush1.bf16.msra.mxu0 %v1265
    %1754 = vmatprep.subr.bf16.mxu0 %v1270
    %1755 = vmatpush1.bf16.msra.mxu0 %v1269
    %1756 = vmatprep.mubr.bf16.mxu0 %v224
    %1757 = vmatmul.mubr.bf16.gmra.mrb[0].mxu0 %v223
    %v1758 = vpop.f32.mrb[0].mxu0
    %v1759 = vadd.f32 %v1646, %v1758
    %v1760 = vpop.f32.mrb[0].mxu0
    %v1761 = vadd.f32 %v1648, %v1760
    %v1762 = vpop.f32.mrb[0].mxu0
    %v1763 = vadd.f32 %v1650, %v1762
    %v1764 = vpop.f32.mrb[0].mxu0
    %v1765 = vadd.f32 %v1652, %v1764
    %1766 = vmatprep.mubr.bf16.mxu0 %v231
    %1767 = vmatmul.mubr.bf16.gmra.mrb[0].mxu0 %v230
    %v1768 = vpop.f32.mrb[0].mxu0
    %v1769 = vadd.f32 %v1656, %v1768
    %v1770 = vpop.f32.mrb[0].mxu0
    %v1771 = vadd.f32 %v1658, %v1770
    %v1772 = vpop.f32.mrb[0].mxu0
    %v1773 = vadd.f32 %v1660, %v1772
    %v1774 = vpop.f32.mrb[0].mxu0
    %v1775 = vadd.f32 %v1662, %v1774
    %1776 = vmatprep.mubr.bf16.mxu0 %v238
    %1777 = vmatmul.mubr.bf16.gmra.mrb[0].mxu0 %v237
    %v1778 = vpop.f32.mrb[0].mxu0
    %v1779 = vadd.f32 %v1666, %v1778
    %v1780 = vpop.f32.mrb[0].mxu0
    %v1781 = vadd.f32 %v1668, %v1780
    %v1782 = vpop.f32.mrb[0].mxu0
    %v1783 = vadd.f32 %v1670, %v1782
    %v1784 = vpop.f32.mrb[0].mxu0
    %v1785 = vadd.f32 %v1672, %v1784
    %1786 = vmatprep.mubr.bf16.mxu0 %v245
    %1787 = vmatmul.mubr.bf16.gmra.mrb[0].mxu0 %v244
    %v1788 = vpop.f32.mrb[0].mxu0
    %v1789 = vadd.f32 %v1676, %v1788
    %v1790 = vpop.f32.mrb[0].mxu0
    %v1791 = vadd.f32 %v1678, %v1790
    %v1792 = vpop.f32.mrb[0].mxu0
    %v1793 = vadd.f32 %v1680, %v1792
    %v1794 = vpop.f32.mrb[0].mxu0
    %v1795 = vadd.f32 %v1682, %v1794
    %1796 = vmatprep.mubr.bf16.mxu0 %v252
    %1797 = vmatmul.mubr.bf16.gmra.mrb[0].mxu0 %v251
    %v1798 = vpop.f32.mrb[0].mxu0
    %v1799 = vadd.f32 %v1686, %v1798
    %v1800 = vpop.f32.mrb[0].mxu0
    %v1801 = vadd.f32 %v1688, %v1800
    %v1802 = vpop.f32.mrb[0].mxu0
    %v1803 = vadd.f32 %v1690, %v1802
    %v1804 = vpop.f32.mrb[0].mxu0
    %v1805 = vadd.f32 %v1692, %v1804
    %1806 = vmatprep.mubr.bf16.mxu0 %v259
    %1807 = vmatmul.mubr.bf16.gmra.mrb[0].mxu0 %v258
    %v1808 = vpop.f32.mrb[0].mxu0
    %v1809 = vadd.f32 %v1696, %v1808
    %v1810 = vpop.f32.mrb[0].mxu0
    %v1811 = vadd.f32 %v1698, %v1810
    %v1812 = vpop.f32.mrb[0].mxu0
    %v1813 = vadd.f32 %v1700, %v1812
    %v1814 = vpop.f32.mrb[0].mxu0
    %v1815 = vadd.f32 %v1702, %v1814
    %1816 = vmatprep.mubr.bf16.mxu0 %v266
    %1817 = vmatmul.mubr.bf16.gmra.mrb[0].mxu0 %v265
    %v1818 = vpop.f32.mrb[0].mxu0
    %v1819 = vadd.f32 %v1706, %v1818
    %v1820 = vpop.f32.mrb[0].mxu0
    %v1821 = vadd.f32 %v1708, %v1820
    %v1822 = vpop.f32.mrb[0].mxu0
    %v1823 = vadd.f32 %v1710, %v1822
    %v1824 = vpop.f32.mrb[0].mxu0
    %v1825 = vadd.f32 %v1712, %v1824
    %1826 = vmatprep.mubr.bf16.mxu0 %v273
    %1827 = vmatmul.mubr.bf16.gmra.mrb[0].mxu0 %v272
    %v1828 = vpop.f32.mrb[0].mxu0
    %v1829 = vadd.f32 %v1716, %v1828
    %v1830 = vpop.f32.mrb[0].mxu0
    %v1831 = vadd.f32 %v1718, %v1830
    %v1832 = vpop.f32.mrb[0].mxu0
    %v1833 = vadd.f32 %v1720, %v1832
    %v1834 = vpop.f32.mrb[0].mxu0
    %v1835 = vadd.f32 %v1722, %v1834
    %1836 = vdwg.mxu0
    %1837 = vmatprep.subr.bf16.mxu0 %v1274
    %1838 = vmatpush1.bf16.msra.mxu0 %v1273
    %1839 = vmatprep.subr.bf16.mxu0 0
    %1840 = vmatpush1.bf16.msra.mxu0 0
    %1841 = vmatprep.subr.bf16.mxu0 0
    %1842 = vmatpush1.bf16.msra.mxu0 0
    %1843 = vmatprep.subr.bf16.mxu0 0
    %1844 = vmatpush1.bf16.msra.mxu0 0
    %1845 = vmatprep.subr.bf16.mxu0 0
    %1846 = vmatpush1.bf16.msra.mxu0 0
    %1847 = vmatprep.subr.bf16.mxu0 0
    %1848 = vmatpush1.bf16.msra.mxu0 0
    %1849 = vmatprep.subr.bf16.mxu0 0
    %1850 = vmatpush1.bf16.msra.mxu0 0
    %1851 = vmatprep.subr.bf16.mxu0 0
    %1852 = vmatpush1.bf16.msra.mxu0 0
    %1853 = vmatprep.subr.bf16.mxu0 0
    %1854 = vmatpush1.bf16.msra.mxu0 0
    %1855 = vmatprep.subr.bf16.mxu0 0
    %1856 = vmatpush1.bf16.msra.mxu0 0
    %1857 = vmatprep.subr.bf16.mxu0 0
    %1858 = vmatpush1.bf16.msra.mxu0 0
    %1859 = vmatprep.subr.bf16.mxu0 0
    %1860 = vmatpush1.bf16.msra.mxu0 0
    %1861 = vmatprep.subr.bf16.mxu0 0
    %1862 = vmatpush1.bf16.msra.mxu0 0
    %1863 = vmatprep.subr.bf16.mxu0 0
    %1864 = vmatpush1.bf16.msra.mxu0 0
    %1865 = vmatprep.subr.bf16.mxu0 0
    %1866 = vmatpush1.bf16.msra.mxu0 0
    %1867 = vmatprep.subr.bf16.mxu0 0
    %1868 = vmatpush1.bf16.msra.mxu0 0
    %1869 = vmatprep.mubr.bf16.mxu0 0
    %1870 = vmatmul.mubr.bf16.gmra.mrb[0].mxu0 %v1475
    %v1871 = vpop.f32.mrb[0].mxu0
    %v1872 = vadd.f32 %v1759, %v1871
    %v1873 = vpop.f32.mrb[0].mxu0
    %v1874 = vadd.f32 %v1761, %v1873
    %v1875 = vpop.f32.mrb[0].mxu0
    %v1876 = vadd.f32 %v1763, %v1875
    %v1877 = vpop.f32.mrb[0].mxu0
    %v1878 = vadd.f32 %v1765, %v1877
    %1879 = vmatprep.mubr.bf16.mxu0 0
    %1880 = vmatmul.mubr.bf16.gmra.mrb[0].mxu0 %v1478
    %v1881 = vpop.f32.mrb[0].mxu0
    %v1882 = vadd.f32 %v1769, %v1881
    %v1883 = vpop.f32.mrb[0].mxu0
    %v1884 = vadd.f32 %v1771, %v1883
    %v1885 = vpop.f32.mrb[0].mxu0
    %v1886 = vadd.f32 %v1773, %v1885
    %v1887 = vpop.f32.mrb[0].mxu0
    %v1888 = vadd.f32 %v1775, %v1887
    %1889 = vmatprep.mubr.bf16.mxu0 0
    %1890 = vmatmul.mubr.bf16.gmra.mrb[0].mxu0 %v1481
    %v1891 = vpop.f32.mrb[0].mxu0
    %v1892 = vadd.f32 %v1779, %v1891
    %v1893 = vpop.f32.mrb[0].mxu0
    %v1894 = vadd.f32 %v1781, %v1893
    %v1895 = vpop.f32.mrb[0].mxu0
    %v1896 = vadd.f32 %v1783, %v1895
    %v1897 = vpop.f32.mrb[0].mxu0
    %v1898 = vadd.f32 %v1785, %v1897
    %1899 = vmatprep.mubr.bf16.mxu0 0
    %1900 = vmatmul.mubr.bf16.gmra.mrb[0].mxu0 %v1484
    %v1901 = vpop.f32.mrb[0].mxu0
    %v1902 = vadd.f32 %v1789, %v1901
    %v1903 = vpop.f32.mrb[0].mxu0
    %v1904 = vadd.f32 %v1791, %v1903
    %v1905 = vpop.f32.mrb[0].mxu0
    %v1906 = vadd.f32 %v1793, %v1905
    %v1907 = vpop.f32.mrb[0].mxu0
    %v1908 = vadd.f32 %v1795, %v1907
    %1909 = vmatprep.mubr.bf16.mxu0 0
    %1910 = vmatmul.mubr.bf16.gmra.mrb[0].mxu0 %v1487
    %v1911 = vpop.f32.mrb[0].mxu0
    %v1912 = vadd.f32 %v1799, %v1911
    %v1913 = vpop.f32.mrb[0].mxu0
    %v1914 = vadd.f32 %v1801, %v1913
    %v1915 = vpop.f32.mrb[0].mxu0
    %v1916 = vadd.f32 %v1803, %v1915
    %v1917 = vpop.f32.mrb[0].mxu0
    %v1918 = vadd.f32 %v1805, %v1917
    %1919 = vmatprep.mubr.bf16.mxu0 0
    %1920 = vmatmul.mubr.bf16.gmra.mrb[0].mxu0 %v1490
    %v1921 = vpop.f32.mrb[0].mxu0
    %v1922 = vadd.f32 %v1809, %v1921
    %v1923 = vpop.f32.mrb[0].mxu0
    %v1924 = vadd.f32 %v1811, %v1923
    %v1925 = vpop.f32.mrb[0].mxu0
    %v1926 = vadd.f32 %v1813, %v1925
    %v1927 = vpop.f32.mrb[0].mxu0
    %v1928 = vadd.f32 %v1815, %v1927
    %1929 = vmatprep.mubr.bf16.mxu0 0
    %1930 = vmatmul.mubr.bf16.gmra.mrb[0].mxu0 %v1493
    %v1931 = vpop.f32.mrb[0].mxu0
    %v1932 = vadd.f32 %v1819, %v1931
    %v1933 = vpop.f32.mrb[0].mxu0
    %v1934 = vadd.f32 %v1821, %v1933
    %v1935 = vpop.f32.mrb[0].mxu0
    %v1936 = vadd.f32 %v1823, %v1935
    %v1937 = vpop.f32.mrb[0].mxu0
    %v1938 = vadd.f32 %v1825, %v1937
    %1939 = vmatprep.mubr.bf16.mxu0 0
    %1940 = vmatmul.mubr.bf16.gmra.mrb[0].mxu0 %v1496
    %v1941 = vpop.f32.mrb[0].mxu0
    %v1942 = vadd.f32 %v1829, %v1941
    %v1943 = vpop.f32.mrb[0].mxu0
    %v1944 = vadd.f32 %v1831, %v1943
    %v1945 = vpop.f32.mrb[0].mxu0
    %v1946 = vadd.f32 %v1833, %v1945
    %v1947 = vpop.f32.mrb[0].mxu0
    %v1948 = vadd.f32 %v1835, %v1947
    %1949 = vdwg.mxu0
    %1950 = vmatprep.subr.bf16.mxu0 %v1084
    %1951 = vmatpush1.bf16.msra.mxu0 %v1083
    %1952 = vmatprep.subr.bf16.mxu0 %v1088
    %1953 = vmatpush1.bf16.msra.mxu0 %v1087
    %1954 = vmatprep.subr.bf16.mxu0 %v1092
    %1955 = vmatpush1.bf16.msra.mxu0 %v1091
    %1956 = vmatprep.subr.bf16.mxu0 %v1096
    %1957 = vmatpush1.bf16.msra.mxu0 %v1095
    %1958 = vmatprep.subr.bf16.mxu0 %v1100
    %1959 = vmatpush1.bf16.msra.mxu0 %v1099
    %1960 = vmatprep.subr.bf16.mxu0 %v1104
    %1961 = vmatpush1.bf16.msra.mxu0 %v1103
    %1962 = vmatprep.subr.bf16.mxu0 %v1108
    %1963 = vmatpush1.bf16.msra.mxu0 %v1107
    %1964 = vmatprep.subr.bf16.mxu0 %v1112
    %1965 = vmatpush1.bf16.msra.mxu0 %v1111
    %1966 = vmatprep.subr.bf16.mxu0 %v1116
    %1967 = vmatpush1.bf16.msra.mxu0 %v1115
    %1968 = vmatprep.subr.bf16.mxu0 %v1120
    %1969 = vmatpush1.bf16.msra.mxu0 %v1119
    %1970 = vmatprep.subr.bf16.mxu0 %v1124
    %1971 = vmatpush1.bf16.msra.mxu0 %v1123
    %1972 = vmatprep.subr.bf16.mxu0 %v1128
    %1973 = vmatpush1.bf16.msra.mxu0 %v1127
    %1974 = vmatprep.subr.bf16.mxu0 %v1132
    %1975 = vmatpush1.bf16.msra.mxu0 %v1131
    %1976 = vmatprep.subr.bf16.mxu0 %v1136
    %1977 = vmatpush1.bf16.msra.mxu0 %v1135
    %1978 = vmatprep.subr.bf16.mxu0 %v1140
    %1979 = vmatpush1.bf16.msra.mxu0 %v1139
    %1980 = vmatprep.subr.bf16.mxu0 %v1144
    %1981 = vmatpush1.bf16.msra.mxu0 %v1143
    %1982 = vmatprep.mubr.bf16.mxu0 %v220
    %1983 = vmatmul.mubr.bf16.gmra.mrb[0].mxu0 %v219
    %v1984 = vpop.f32.mrb[0].mxu0
    %v1985 = vadd.f32 %v484, %v1984
    %v1986 = vpop.f32.mrb[0].mxu0
    %v1987 = vadd.f32 %v488, %v1986
    %v1988 = vpop.f32.mrb[0].mxu0
    %v1989 = vadd.f32 %v484, %v1988
    %v1990 = vpop.f32.mrb[0].mxu0
    %v1991 = vadd.f32 %v488, %v1990
    %1992 = vmatprep.mubr.bf16.mxu0 %v227
    %1993 = vmatmul.mubr.bf16.gmra.mrb[0].mxu0 %v226
    %v1994 = vpop.f32.mrb[0].mxu0
    %v1995 = vadd.f32 %v484, %v1994
    %v1996 = vpop.f32.mrb[0].mxu0
    %v1997 = vadd.f32 %v488, %v1996
    %v1998 = vpop.f32.mrb[0].mxu0
    %v1999 = vadd.f32 %v484, %v1998
    %v2000 = vpop.f32.mrb[0].mxu0
    %v2001 = vadd.f32 %v488, %v2000
    %2002 = vmatprep.mubr.bf16.mxu0 %v234
    %2003 = vmatmul.mubr.bf16.gmra.mrb[0].mxu0 %v233
    %v2004 = vpop.f32.mrb[0].mxu0
    %v2005 = vadd.f32 %v484, %v2004
    %v2006 = vpop.f32.mrb[0].mxu0
    %v2007 = vadd.f32 %v488, %v2006
    %v2008 = vpop.f32.mrb[0].mxu0
    %v2009 = vadd.f32 %v484, %v2008
    %v2010 = vpop.f32.mrb[0].mxu0
    %v2011 = vadd.f32 %v488, %v2010
    %2012 = vmatprep.mubr.bf16.mxu0 %v241
    %2013 = vmatmul.mubr.bf16.gmra.mrb[0].mxu0 %v240
    %v2014 = vpop.f32.mrb[0].mxu0
    %v2015 = vadd.f32 %v484, %v2014
    %v2016 = vpop.f32.mrb[0].mxu0
    %v2017 = vadd.f32 %v488, %v2016
    %v2018 = vpop.f32.mrb[0].mxu0
    %v2019 = vadd.f32 %v484, %v2018
    %v2020 = vpop.f32.mrb[0].mxu0
    %v2021 = vadd.f32 %v488, %v2020
    %2022 = vmatprep.mubr.bf16.mxu0 %v248
    %2023 = vmatmul.mubr.bf16.gmra.mrb[0].mxu0 %v247
    %v2024 = vpop.f32.mrb[0].mxu0
    %v2025 = vadd.f32 %v484, %v2024
    %v2026 = vpop.f32.mrb[0].mxu0
    %v2027 = vadd.f32 %v488, %v2026
    %v2028 = vpop.f32.mrb[0].mxu0
    %v2029 = vadd.f32 %v484, %v2028
    %v2030 = vpop.f32.mrb[0].mxu0
    %v2031 = vadd.f32 %v488, %v2030
    %2032 = vmatprep.mubr.bf16.mxu0 %v255
    %2033 = vmatmul.mubr.bf16.gmra.mrb[0].mxu0 %v254
    %v2034 = vpop.f32.mrb[0].mxu0
    %v2035 = vadd.f32 %v484, %v2034
    %v2036 = vpop.f32.mrb[0].mxu0
    %v2037 = vadd.f32 %v488, %v2036
    %v2038 = vpop.f32.mrb[0].mxu0
    %v2039 = vadd.f32 %v484, %v2038
    %v2040 = vpop.f32.mrb[0].mxu0
    %v2041 = vadd.f32 %v488, %v2040
    %2042 = vmatprep.mubr.bf16.mxu0 %v262
    %2043 = vmatmul.mubr.bf16.gmra.mrb[0].mxu0 %v261
    %v2044 = vpop.f32.mrb[0].mxu0
    %v2045 = vadd.f32 %v484, %v2044
    %v2046 = vpop.f32.mrb[0].mxu0
    %v2047 = vadd.f32 %v488, %v2046
    %v2048 = vpop.f32.mrb[0].mxu0
    %v2049 = vadd.f32 %v484, %v2048
    %v2050 = vpop.f32.mrb[0].mxu0
    %v2051 = vadd.f32 %v488, %v2050
    %2052 = vmatprep.mubr.bf16.mxu0 %v269
    %2053 = vmatmul.mubr.bf16.gmra.mrb[0].mxu0 %v268
    %v2054 = vpop.f32.mrb[0].mxu0
    %v2055 = vadd.f32 %v484, %v2054
    %v2056 = vpop.f32.mrb[0].mxu0
    %v2057 = vadd.f32 %v488, %v2056
    %v2058 = vpop.f32.mrb[0].mxu0
    %v2059 = vadd.f32 %v484, %v2058
    %v2060 = vpop.f32.mrb[0].mxu0
    %v2061 = vadd.f32 %v488, %v2060
    %2062 = vdwg.mxu0
    %2063 = vmatprep.subr.bf16.mxu0 %v1148
    %2064 = vmatpush1.bf16.msra.mxu0 %v1147
    %2065 = vmatprep.subr.bf16.mxu0 %v1152
    %2066 = vmatpush1.bf16.msra.mxu0 %v1151
    %2067 = vmatprep.subr.bf16.mxu0 %v1156
    %2068 = vmatpush1.bf16.msra.mxu0 %v1155
    %2069 = vmatprep.subr.bf16.mxu0 %v1160
    %2070 = vmatpush1.bf16.msra.mxu0 %v1159
    %2071 = vmatprep.subr.bf16.mxu0 %v1164
    %2072 = vmatpush1.bf16.msra.mxu0 %v1163
    %2073 = vmatprep.subr.bf16.mxu0 %v1168
    %2074 = vmatpush1.bf16.msra.mxu0 %v1167
    %2075 = vmatprep.subr.bf16.mxu0 %v1172
    %2076 = vmatpush1.bf16.msra.mxu0 %v1171
    %2077 = vmatprep.subr.bf16.mxu0 %v1176
    %2078 = vmatpush1.bf16.msra.mxu0 %v1175
    %2079 = vmatprep.subr.bf16.mxu0 %v1180
    %2080 = vmatpush1.bf16.msra.mxu0 %v1179
    %2081 = vmatprep.subr.bf16.mxu0 %v1184
    %2082 = vmatpush1.bf16.msra.mxu0 %v1183
    %2083 = vmatprep.subr.bf16.mxu0 %v1188
    %2084 = vmatpush1.bf16.msra.mxu0 %v1187
    %2085 = vmatprep.subr.bf16.mxu0 %v1192
    %2086 = vmatpush1.bf16.msra.mxu0 %v1191
    %2087 = vmatprep.subr.bf16.mxu0 %v1196
    %2088 = vmatpush1.bf16.msra.mxu0 %v1195
    %2089 = vmatprep.subr.bf16.mxu0 %v1200
    %2090 = vmatpush1.bf16.msra.mxu0 %v1199
    %2091 = vmatprep.subr.bf16.mxu0 %v1204
    %2092 = vmatpush1.bf16.msra.mxu0 %v1203
    %2093 = vmatprep.subr.bf16.mxu0 %v1208
    %2094 = vmatpush1.bf16.msra.mxu0 %v1207
    %2095 = vmatprep.mubr.bf16.mxu0 %v222
    %2096 = vmatmul.mubr.bf16.gmra.mrb[0].mxu0 %v221
    %v2097 = vpop.f32.mrb[0].mxu0
    %v2098 = vadd.f32 %v1985, %v2097
    %v2099 = vpop.f32.mrb[0].mxu0
    %v2100 = vadd.f32 %v1987, %v2099
    %v2101 = vpop.f32.mrb[0].mxu0
    %v2102 = vadd.f32 %v1989, %v2101
    %v2103 = vpop.f32.mrb[0].mxu0
    %v2104 = vadd.f32 %v1991, %v2103
    %2105 = vmatprep.mubr.bf16.mxu0 %v229
    %2106 = vmatmul.mubr.bf16.gmra.mrb[0].mxu0 %v228
    %v2107 = vpop.f32.mrb[0].mxu0
    %v2108 = vadd.f32 %v1995, %v2107
    %v2109 = vpop.f32.mrb[0].mxu0
    %v2110 = vadd.f32 %v1997, %v2109
    %v2111 = vpop.f32.mrb[0].mxu0
    %v2112 = vadd.f32 %v1999, %v2111
    %v2113 = vpop.f32.mrb[0].mxu0
    %v2114 = vadd.f32 %v2001, %v2113
    %2115 = vmatprep.mubr.bf16.mxu0 %v236
    %2116 = vmatmul.mubr.bf16.gmra.mrb[0].mxu0 %v235
    %v2117 = vpop.f32.mrb[0].mxu0
    %v2118 = vadd.f32 %v2005, %v2117
    %v2119 = vpop.f32.mrb[0].mxu0
    %v2120 = vadd.f32 %v2007, %v2119
    %v2121 = vpop.f32.mrb[0].mxu0
    %v2122 = vadd.f32 %v2009, %v2121
    %v2123 = vpop.f32.mrb[0].mxu0
    %v2124 = vadd.f32 %v2011, %v2123
    %2125 = vmatprep.mubr.bf16.mxu0 %v243
    %2126 = vmatmul.mubr.bf16.gmra.mrb[0].mxu0 %v242
    %v2127 = vpop.f32.mrb[0].mxu0
    %v2128 = vadd.f32 %v2015, %v2127
    %v2129 = vpop.f32.mrb[0].mxu0
    %v2130 = vadd.f32 %v2017, %v2129
    %v2131 = vpop.f32.mrb[0].mxu0
    %v2132 = vadd.f32 %v2019, %v2131
    %v2133 = vpop.f32.mrb[0].mxu0
    %v2134 = vadd.f32 %v2021, %v2133
    %2135 = vmatprep.mubr.bf16.mxu0 %v250
    %2136 = vmatmul.mubr.bf16.gmra.mrb[0].mxu0 %v249
    %v2137 = vpop.f32.mrb[0].mxu0
    %v2138 = vadd.f32 %v2025, %v2137
    %v2139 = vpop.f32.mrb[0].mxu0
    %v2140 = vadd.f32 %v2027, %v2139
    %v2141 = vpop.f32.mrb[0].mxu0
    %v2142 = vadd.f32 %v2029, %v2141
    %v2143 = vpop.f32.mrb[0].mxu0
    %v2144 = vadd.f32 %v2031, %v2143
    %2145 = vmatprep.mubr.bf16.mxu0 %v257
    %2146 = vmatmul.mubr.bf16.gmra.mrb[0].mxu0 %v256
    %v2147 = vpop.f32.mrb[0].mxu0
    %v2148 = vadd.f32 %v2035, %v2147
    %v2149 = vpop.f32.mrb[0].mxu0
    %v2150 = vadd.f32 %v2037, %v2149
    %v2151 = vpop.f32.mrb[0].mxu0
    %v2152 = vadd.f32 %v2039, %v2151
    %v2153 = vpop.f32.mrb[0].mxu0
    %v2154 = vadd.f32 %v2041, %v2153
    %2155 = vmatprep.mubr.bf16.mxu0 %v264
    %2156 = vmatmul.mubr.bf16.gmra.mrb[0].mxu0 %v263
    %v2157 = vpop.f32.mrb[0].mxu0
    %v2158 = vadd.f32 %v2045, %v2157
    %v2159 = vpop.f32.mrb[0].mxu0
    %v2160 = vadd.f32 %v2047, %v2159
    %v2161 = vpop.f32.mrb[0].mxu0
    %v2162 = vadd.f32 %v2049, %v2161
    %v2163 = vpop.f32.mrb[0].mxu0
    %v2164 = vadd.f32 %v2051, %v2163
    %2165 = vmatprep.mubr.bf16.mxu0 %v271
    %2166 = vmatmul.mubr.bf16.gmra.mrb[0].mxu0 %v270
    %v2167 = vpop.f32.mrb[0].mxu0
    %v2168 = vadd.f32 %v2055, %v2167
    %v2169 = vpop.f32.mrb[0].mxu0
    %v2170 = vadd.f32 %v2057, %v2169
    %v2171 = vpop.f32.mrb[0].mxu0
    %v2172 = vadd.f32 %v2059, %v2171
    %v2173 = vpop.f32.mrb[0].mxu0
    %v2174 = vadd.f32 %v2061, %v2173
    %2175 = vdwg.mxu0
    %2176 = vmatprep.subr.bf16.mxu0 %v1212
    %2177 = vmatpush1.bf16.msra.mxu0 %v1211
    %2178 = vmatprep.subr.bf16.mxu0 %v1216
    %2179 = vmatpush1.bf16.msra.mxu0 %v1215
    %2180 = vmatprep.subr.bf16.mxu0 %v1220
    %2181 = vmatpush1.bf16.msra.mxu0 %v1219
    %2182 = vmatprep.subr.bf16.mxu0 %v1224
    %2183 = vmatpush1.bf16.msra.mxu0 %v1223
    %2184 = vmatprep.subr.bf16.mxu0 %v1228
    %2185 = vmatpush1.bf16.msra.mxu0 %v1227
    %2186 = vmatprep.subr.bf16.mxu0 %v1232
    %2187 = vmatpush1.bf16.msra.mxu0 %v1231
    %2188 = vmatprep.subr.bf16.mxu0 %v1236
    %2189 = vmatpush1.bf16.msra.mxu0 %v1235
    %2190 = vmatprep.subr.bf16.mxu0 %v1240
    %2191 = vmatpush1.bf16.msra.mxu0 %v1239
    %2192 = vmatprep.subr.bf16.mxu0 %v1244
    %2193 = vmatpush1.bf16.msra.mxu0 %v1243
    %2194 = vmatprep.subr.bf16.mxu0 %v1248
    %2195 = vmatpush1.bf16.msra.mxu0 %v1247
    %2196 = vmatprep.subr.bf16.mxu0 %v1252
    %2197 = vmatpush1.bf16.msra.mxu0 %v1251
    %2198 = vmatprep.subr.bf16.mxu0 %v1256
    %2199 = vmatpush1.bf16.msra.mxu0 %v1255
    %2200 = vmatprep.subr.bf16.mxu0 %v1260
    %2201 = vmatpush1.bf16.msra.mxu0 %v1259
    %2202 = vmatprep.subr.bf16.mxu0 %v1264
    %2203 = vmatpush1.bf16.msra.mxu0 %v1263
    %2204 = vmatprep.subr.bf16.mxu0 %v1268
    %2205 = vmatpush1.bf16.msra.mxu0 %v1267
    %2206 = vmatprep.subr.bf16.mxu0 %v1272
    %2207 = vmatpush1.bf16.msra.mxu0 %v1271
    %2208 = vmatprep.mubr.bf16.mxu0 %v224
    %2209 = vmatmul.mubr.bf16.gmra.mrb[0].mxu0 %v223
    %v2210 = vpop.f32.mrb[0].mxu0
    %v2211 = vadd.f32 %v2098, %v2210
    %v2212 = vpop.f32.mrb[0].mxu0
    %v2213 = vadd.f32 %v2100, %v2212
    %v2214 = vpop.f32.mrb[0].mxu0
    %v2215 = vadd.f32 %v2102, %v2214
    %v2216 = vpop.f32.mrb[0].mxu0
    %v2217 = vadd.f32 %v2104, %v2216
    %2218 = vmatprep.mubr.bf16.mxu0 %v231
    %2219 = vmatmul.mubr.bf16.gmra.mrb[0].mxu0 %v230
    %v2220 = vpop.f32.mrb[0].mxu0
    %v2221 = vadd.f32 %v2108, %v2220
    %v2222 = vpop.f32.mrb[0].mxu0
    %v2223 = vadd.f32 %v2110, %v2222
    %v2224 = vpop.f32.mrb[0].mxu0
    %v2225 = vadd.f32 %v2112, %v2224
    %v2226 = vpop.f32.mrb[0].mxu0
    %v2227 = vadd.f32 %v2114, %v2226
    %2228 = vmatprep.mubr.bf16.mxu0 %v238
    %2229 = vmatmul.mubr.bf16.gmra.mrb[0].mxu0 %v237
    %v2230 = vpop.f32.mrb[0].mxu0
    %v2231 = vadd.f32 %v2118, %v2230
    %v2232 = vpop.f32.mrb[0].mxu0
    %v2233 = vadd.f32 %v2120, %v2232
    %v2234 = vpop.f32.mrb[0].mxu0
    %v2235 = vadd.f32 %v2122, %v2234
    %v2236 = vpop.f32.mrb[0].mxu0
    %v2237 = vadd.f32 %v2124, %v2236
    %2238 = vmatprep.mubr.bf16.mxu0 %v245
    %2239 = vmatmul.mubr.bf16.gmra.mrb[0].mxu0 %v244
    %v2240 = vpop.f32.mrb[0].mxu0
    %v2241 = vadd.f32 %v2128, %v2240
    %v2242 = vpop.f32.mrb[0].mxu0
    %v2243 = vadd.f32 %v2130, %v2242
    %v2244 = vpop.f32.mrb[0].mxu0
    %v2245 = vadd.f32 %v2132, %v2244
    %v2246 = vpop.f32.mrb[0].mxu0
    %v2247 = vadd.f32 %v2134, %v2246
    %2248 = vmatprep.mubr.bf16.mxu0 %v252
    %2249 = vmatmul.mubr.bf16.gmra.mrb[0].mxu0 %v251
    %v2250 = vpop.f32.mrb[0].mxu0
    %v2251 = vadd.f32 %v2138, %v2250
    %v2252 = vpop.f32.mrb[0].mxu0
    %v2253 = vadd.f32 %v2140, %v2252
    %v2254 = vpop.f32.mrb[0].mxu0
    %v2255 = vadd.f32 %v2142, %v2254
    %v2256 = vpop.f32.mrb[0].mxu0
    %v2257 = vadd.f32 %v2144, %v2256
    %2258 = vmatprep.mubr.bf16.mxu0 %v259
    %2259 = vmatmul.mubr.bf16.gmra.mrb[0].mxu0 %v258
    %v2260 = vpop.f32.mrb[0].mxu0
    %v2261 = vadd.f32 %v2148, %v2260
    %v2262 = vpop.f32.mrb[0].mxu0
    %v2263 = vadd.f32 %v2150, %v2262
    %v2264 = vpop.f32.mrb[0].mxu0
    %v2265 = vadd.f32 %v2152, %v2264
    %v2266 = vpop.f32.mrb[0].mxu0
    %v2267 = vadd.f32 %v2154, %v2266
    %2268 = vmatprep.mubr.bf16.mxu0 %v266
    %2269 = vmatmul.mubr.bf16.gmra.mrb[0].mxu0 %v265
    %v2270 = vpop.f32.mrb[0].mxu0
    %v2271 = vadd.f32 %v2158, %v2270
    %v2272 = vpop.f32.mrb[0].mxu0
    %v2273 = vadd.f32 %v2160, %v2272
    %v2274 = vpop.f32.mrb[0].mxu0
    %v2275 = vadd.f32 %v2162, %v2274
    %v2276 = vpop.f32.mrb[0].mxu0
    %v2277 = vadd.f32 %v2164, %v2276
    %2278 = vmatprep.mubr.bf16.mxu0 %v273
    %2279 = vmatmul.mubr.bf16.gmra.mrb[0].mxu0 %v272
    %v2280 = vpop.f32.mrb[0].mxu0
    %v2281 = vadd.f32 %v2168, %v2280
    %v2282 = vpop.f32.mrb[0].mxu0
    %v2283 = vadd.f32 %v2170, %v2282
    %v2284 = vpop.f32.mrb[0].mxu0
    %v2285 = vadd.f32 %v2172, %v2284
    %v2286 = vpop.f32.mrb[0].mxu0
    %v2287 = vadd.f32 %v2174, %v2286
    %2288 = vdwg.mxu0
    %2289 = vmatprep.subr.bf16.mxu0 %v1276
    %2290 = vmatpush1.bf16.msra.mxu0 %v1275
    %2291 = vmatprep.subr.bf16.mxu0 0
    %2292 = vmatpush1.bf16.msra.mxu0 0
    %2293 = vmatprep.subr.bf16.mxu0 0
    %2294 = vmatpush1.bf16.msra.mxu0 0
    %2295 = vmatprep.subr.bf16.mxu0 0
    %2296 = vmatpush1.bf16.msra.mxu0 0
    %2297 = vmatprep.subr.bf16.mxu0 0
    %2298 = vmatpush1.bf16.msra.mxu0 0
    %2299 = vmatprep.subr.bf16.mxu0 0
    %2300 = vmatpush1.bf16.msra.mxu0 0
    %2301 = vmatprep.subr.bf16.mxu0 0
    %2302 = vmatpush1.bf16.msra.mxu0 0
    %2303 = vmatprep.subr.bf16.mxu0 0
    %2304 = vmatpush1.bf16.msra.mxu0 0
    %2305 = vmatprep.subr.bf16.mxu0 0
    %2306 = vmatpush1.bf16.msra.mxu0 0
    %2307 = vmatprep.subr.bf16.mxu0 0
    %2308 = vmatpush1.bf16.msra.mxu0 0
    %2309 = vmatprep.subr.bf16.mxu0 0
    %2310 = vmatpush1.bf16.msra.mxu0 0
    %2311 = vmatprep.subr.bf16.mxu0 0
    %2312 = vmatpush1.bf16.msra.mxu0 0
    %2313 = vmatprep.subr.bf16.mxu0 0
    %2314 = vmatpush1.bf16.msra.mxu0 0
    %2315 = vmatprep.subr.bf16.mxu0 0
    %2316 = vmatpush1.bf16.msra.mxu0 0
    %2317 = vmatprep.subr.bf16.mxu0 0
    %2318 = vmatpush1.bf16.msra.mxu0 0
    %2319 = vmatprep.subr.bf16.mxu0 0
    %2320 = vmatpush1.bf16.msra.mxu0 0
    %2321 = vmatprep.mubr.bf16.mxu0 0
    %2322 = vmatmul.mubr.bf16.gmra.mrb[0].mxu0 %v1475
    %v2323 = vpop.f32.mrb[0].mxu0
    %v2324 = vadd.f32 %v2211, %v2323
    %v2325 = vpop.f32.mrb[0].mxu0
    %v2326 = vadd.f32 %v2213, %v2325
    %v2327 = vpop.f32.mrb[0].mxu0
    %v2328 = vadd.f32 %v2215, %v2327
    %v2329 = vpop.f32.mrb[0].mxu0
    %v2330 = vadd.f32 %v2217, %v2329
    %2331 = vmatprep.mubr.bf16.mxu0 0
    %2332 = vmatmul.mubr.bf16.gmra.mrb[0].mxu0 %v1478
    %v2333 = vpop.f32.mrb[0].mxu0
    %v2334 = vadd.f32 %v2221, %v2333
    %v2335 = vpop.f32.mrb[0].mxu0
    %v2336 = vadd.f32 %v2223, %v2335
    %v2337 = vpop.f32.mrb[0].mxu0
    %v2338 = vadd.f32 %v2225, %v2337
    %v2339 = vpop.f32.mrb[0].mxu0
    %v2340 = vadd.f32 %v2227, %v2339
    %2341 = vmatprep.mubr.bf16.mxu0 0
    %2342 = vmatmul.mubr.bf16.gmra.mrb[0].mxu0 %v1481
    %v2343 = vpop.f32.mrb[0].mxu0
    %v2344 = vadd.f32 %v2231, %v2343
    %v2345 = vpop.f32.mrb[0].mxu0
    %v2346 = vadd.f32 %v2233, %v2345
    %v2347 = vpop.f32.mrb[0].mxu0
    %v2348 = vadd.f32 %v2235, %v2347
    %v2349 = vpop.f32.mrb[0].mxu0
    %v2350 = vadd.f32 %v2237, %v2349
    %2351 = vmatprep.mubr.bf16.mxu0 0
    %2352 = vmatmul.mubr.bf16.gmra.mrb[0].mxu0 %v1484
    %v2353 = vpop.f32.mrb[0].mxu0
    %v2354 = vadd.f32 %v2241, %v2353
    %v2355 = vpop.f32.mrb[0].mxu0
    %v2356 = vadd.f32 %v2243, %v2355
    %v2357 = vpop.f32.mrb[0].mxu0
    %v2358 = vadd.f32 %v2245, %v2357
    %v2359 = vpop.f32.mrb[0].mxu0
    %v2360 = vadd.f32 %v2247, %v2359
    %2361 = vmatprep.mubr.bf16.mxu0 0
    %2362 = vmatmul.mubr.bf16.gmra.mrb[0].mxu0 %v1487
    %v2363 = vpop.f32.mrb[0].mxu0
    %v2364 = vadd.f32 %v2251, %v2363
    %v2365 = vpop.f32.mrb[0].mxu0
    %v2366 = vadd.f32 %v2253, %v2365
    %v2367 = vpop.f32.mrb[0].mxu0
    %v2368 = vadd.f32 %v2255, %v2367
    %v2369 = vpop.f32.mrb[0].mxu0
    %v2370 = vadd.f32 %v2257, %v2369
    %2371 = vmatprep.mubr.bf16.mxu0 0
    %2372 = vmatmul.mubr.bf16.gmra.mrb[0].mxu0 %v1490
    %v2373 = vpop.f32.mrb[0].mxu0
    %v2374 = vadd.f32 %v2261, %v2373
    %v2375 = vpop.f32.mrb[0].mxu0
    %v2376 = vadd.f32 %v2263, %v2375
    %v2377 = vpop.f32.mrb[0].mxu0
    %v2378 = vadd.f32 %v2265, %v2377
    %v2379 = vpop.f32.mrb[0].mxu0
    %v2380 = vadd.f32 %v2267, %v2379
    %2381 = vmatprep.mubr.bf16.mxu0 0
    %2382 = vmatmul.mubr.bf16.gmra.mrb[0].mxu0 %v1493
    %v2383 = vpop.f32.mrb[0].mxu0
    %v2384 = vadd.f32 %v2271, %v2383
    %v2385 = vpop.f32.mrb[0].mxu0
    %v2386 = vadd.f32 %v2273, %v2385
    %v2387 = vpop.f32.mrb[0].mxu0
    %v2388 = vadd.f32 %v2275, %v2387
    %v2389 = vpop.f32.mrb[0].mxu0
    %v2390 = vadd.f32 %v2277, %v2389
    %2391 = vmatprep.mubr.bf16.mxu0 0
    %2392 = vmatmul.mubr.bf16.gmra.mrb[0].mxu0 %v1496
    %v2393 = vpop.f32.mrb[0].mxu0
    %v2394 = vadd.f32 %v2281, %v2393
    %v2395 = vpop.f32.mrb[0].mxu0
    %v2396 = vadd.f32 %v2283, %v2395
    %v2397 = vpop.f32.mrb[0].mxu0
    %v2398 = vadd.f32 %v2285, %v2397
    %v2399 = vpop.f32.mrb[0].mxu0
    %v2400 = vadd.f32 %v2287, %v2399
    %2401 = vdwg.mxu0
    %v2402 = vpack.c.bf16 %v1876, %v1872
    %v2403 = vpack.c.bf16 %v1878, %v1874
    %v2404 = vpack.c.bf16 %v2328, %v2324
    %v2405 = vpack.c.bf16 %v2330, %v2326
    %v2406 = vpack.c.bf16 %v1886, %v1882
    %v2407 = vpack.c.bf16 %v1888, %v1884
    %v2408 = vpack.c.bf16 %v2338, %v2334
    %v2409 = vpack.c.bf16 %v2340, %v2336
    %v2410 = vpack.c.bf16 %v1896, %v1892
    %v2411 = vpack.c.bf16 %v1898, %v1894
    %v2412 = vpack.c.bf16 %v2348, %v2344
    %v2413 = vpack.c.bf16 %v2350, %v2346
    %v2414 = vpack.c.bf16 %v1906, %v1902
    %v2415 = vpack.c.bf16 %v1908, %v1904
    %v2416 = vpack.c.bf16 %v2358, %v2354
    %v2417 = vpack.c.bf16 %v2360, %v2356
    %v2418 = vpack.c.bf16 %v1916, %v1912
    %v2419 = vpack.c.bf16 %v1918, %v1914
    %v2420 = vpack.c.bf16 %v2368, %v2364
    %v2421 = vpack.c.bf16 %v2370, %v2366
    %v2422 = vpack.c.bf16 %v1926, %v1922
    %v2423 = vpack.c.bf16 %v1928, %v1924
    %v2424 = vpack.c.bf16 %v2378, %v2374
    %v2425 = vpack.c.bf16 %v2380, %v2376
    %v2426 = vpack.c.bf16 %v1936, %v1932
    %v2427 = vpack.c.bf16 %v1938, %v1934
    %v2428 = vpack.c.bf16 %v2388, %v2384
    %v2429 = vpack.c.bf16 %v2390, %v2386
    %v2430 = vpack.c.bf16 %v1946, %v1942
    %v2431 = vpack.c.bf16 %v1948, %v1944
    %v2432 = vpack.c.bf16 %v2398, %v2394
    %v2433 = vpack.c.bf16 %v2400, %v2396
    %v2434 = vmul.bf16 %v2402, 1045249613
    %v2435 = vmul.bf16 %v2403, 1045249613
    %v2436 = vmul.bf16 %v2404, 1045249613
    %v2437 = vmul.bf16 %v2405, 1045249613
    %v2438 = vmul.bf16 %v2406, 1045249613
    %v2439 = vmul.bf16 %v2407, 1045249613
    %v2440 = vmul.bf16 %v2408, 1045249613
    %v2441 = vmul.bf16 %v2409, 1045249613
    %v2442 = vmul.bf16 %v2410, 1045249613
    %v2443 = vmul.bf16 %v2411, 1045249613
    %v2444 = vmul.bf16 %v2412, 1045249613
    %v2445 = vmul.bf16 %v2413, 1045249613
    %v2446 = vmul.bf16 %v2414, 1045249613
    %v2447 = vmul.bf16 %v2415, 1045249613
    %v2448 = vmul.bf16 %v2416, 1045249613
    %v2449 = vmul.bf16 %v2417, 1045249613
    %v2450 = vmul.bf16 %v2418, 1045249613
    %v2451 = vmul.bf16 %v2419, 1045249613
    %v2452 = vmul.bf16 %v2420, 1045249613
    %v2453 = vmul.bf16 %v2421, 1045249613
    %v2454 = vmul.bf16 %v2422, 1045249613
    %v2455 = vmul.bf16 %v2423, 1045249613
    %v2456 = vmul.bf16 %v2424, 1045249613
    %v2457 = vmul.bf16 %v2425, 1045249613
    %v2458 = vmul.bf16 %v2426, 1045249613
    %v2459 = vmul.bf16 %v2427, 1045249613
    %v2460 = vmul.bf16 %v2428, 1045249613
    %v2461 = vmul.bf16 %v2429, 1045249613
    %v2462 = vmul.bf16 %v2430, 1045249613
    %v2463 = vmul.bf16 %v2431, 1045249613
    %v2464 = vmul.bf16 %v2432, 1045249613
    %v2465 = vmul.bf16 %v2433, 1045249613
    %v2466 = vmax.bf16 %v2402, %v2434
    %v2467 = vmax.bf16 %v2403, %v2435
    %v2468 = vmax.bf16 %v2404, %v2436
    %v2469 = vmax.bf16 %v2405, %v2437
    %v2470 = vmax.bf16 %v2406, %v2438
    %v2471 = vmax.bf16 %v2407, %v2439
    %v2472 = vmax.bf16 %v2408, %v2440
    %v2473 = vmax.bf16 %v2409, %v2441
    %v2474 = vmax.bf16 %v2410, %v2442
    %v2475 = vmax.bf16 %v2411, %v2443
    %v2476 = vmax.bf16 %v2412, %v2444
    %v2477 = vmax.bf16 %v2413, %v2445
    %v2478 = vmax.bf16 %v2414, %v2446
    %v2479 = vmax.bf16 %v2415, %v2447
    %v2480 = vmax.bf16 %v2416, %v2448
    %v2481 = vmax.bf16 %v2417, %v2449
    %v2482 = vmax.bf16 %v2418, %v2450
    %v2483 = vmax.bf16 %v2419, %v2451
    %v2484 = vmax.bf16 %v2420, %v2452
    %v2485 = vmax.bf16 %v2421, %v2453
    %v2486 = vmax.bf16 %v2422, %v2454
    %v2487 = vmax.bf16 %v2423, %v2455
    %v2488 = vmax.bf16 %v2424, %v2456
    %v2489 = vmax.bf16 %v2425, %v2457
    %v2490 = vmax.bf16 %v2426, %v2458
    %v2491 = vmax.bf16 %v2427, %v2459
    %v2492 = vmax.bf16 %v2428, %v2460
    %v2493 = vmax.bf16 %v2429, %v2461
    %v2494 = vmax.bf16 %v2430, %v2462
    %v2495 = vmax.bf16 %v2431, %v2463
    %v2496 = vmax.bf16 %v2432, %v2464
    %v2497 = vmax.bf16 %v2433, %v2465
    %v2498 = vld [vmem:[#allocation9] sm:$0xff]
    %v2499 = vld [vmem:[#allocation9 + $0x8] sm:$0xff]
    %v2500 = vld [vmem:[#allocation9 + $0x10] sm:$0xff]
    %v2501 = vld [vmem:[#allocation9 + $0x18] sm:$0xff]
    %v2502 = vld [vmem:[#allocation9 + $0x20] sm:$0xff]
    %v2503 = vld [vmem:[#allocation9 + $0x28] sm:$0xff]
    %v2504 = vld [vmem:[#allocation9 + $0x30] sm:$0xff]
    %v2505 = vld [vmem:[#allocation9 + $0x38] sm:$0xff]
    %v2506 = vld [vmem:[#allocation9 + $0x40] sm:$0xff]
    %v2507 = vld [vmem:[#allocation9 + $0x48] sm:$0xff]
    %v2508 = vld [vmem:[#allocation9 + $0x50] sm:$0xff]
    %v2509 = vld [vmem:[#allocation9 + $0x58] sm:$0xff]
    %v2510 = vld [vmem:[#allocation9 + $0x60] sm:$0xff]
    %v2511 = vld [vmem:[#allocation9 + $0x68] sm:$0xff]
    %v2512 = vld [vmem:[#allocation9 + $0x70] sm:$0xff]
    %v2513 = vld [vmem:[#allocation9 + $0x78] sm:$0xff]
    %v2514 = vld [vmem:[#allocation9 + $0x80] sm:$0xff]
    %v2515 = vld [vmem:[#allocation9 + $0x88] sm:$0xff]
    %v2516 = vld [vmem:[#allocation9 + $0x90] sm:$0xff]
    %v2517 = vld [vmem:[#allocation9 + $0x98] sm:$0xff]
    %v2518 = vld [vmem:[#allocation9 + $0xa0] sm:$0xff]
    %v2519 = vld [vmem:[#allocation9 + $0xa8] sm:$0xff]
    %v2520 = vld [vmem:[#allocation9 + $0xb0] sm:$0xff]
    %v2521 = vld [vmem:[#allocation9 + $0xb8] sm:$0xff]
    %v2522 = vld [vmem:[#allocation9 + $0xc0] sm:$0xff]
    %v2523 = vld [vmem:[#allocation9 + $0xc8] sm:$0xff]
    %v2524 = vld [vmem:[#allocation9 + $0xd0] sm:$0xff]
    %v2525 = vld [vmem:[#allocation9 + $0xd8] sm:$0xff]
    %v2526 = vld [vmem:[#allocation9 + $0xe0] sm:$0xff]
    %v2527 = vld [vmem:[#allocation9 + $0xe8] sm:$0xff]
    %v2528 = vld [vmem:[#allocation9 + $0xf0] sm:$0xff]
    %v2529 = vld [vmem:[#allocation9 + $0xf8] sm:$0xff]
    %v2530 = vld [vmem:[#allocation9 + $0x100] sm:$0xff]
    %v2531 = vld [vmem:[#allocation9 + $0x108] sm:$0xff]
    %v2532 = vld [vmem:[#allocation9 + $0x110] sm:$0xff]
    %v2533 = vld [vmem:[#allocation9 + $0x118] sm:$0xff]
    %v2534 = vld [vmem:[#allocation9 + $0x120] sm:$0xff]
    %v2535 = vld [vmem:[#allocation9 + $0x128] sm:$0xff]
    %v2536 = vld [vmem:[#allocation9 + $0x130] sm:$0xff]
    %v2537 = vld [vmem:[#allocation9 + $0x138] sm:$0xff]
    %v2538 = vld [vmem:[#allocation9 + $0x140] sm:$0xff]
    %v2539 = vld [vmem:[#allocation9 + $0x148] sm:$0xff]
    %v2540 = vld [vmem:[#allocation9 + $0x150] sm:$0xff]
    %v2541 = vld [vmem:[#allocation9 + $0x158] sm:$0xff]
    %v2542 = vld [vmem:[#allocation9 + $0x160] sm:$0xff]
    %v2543 = vld [vmem:[#allocation9 + $0x168] sm:$0xff]
    %v2544 = vld [vmem:[#allocation9 + $0x170] sm:$0xff]
    %v2545 = vld [vmem:[#allocation9 + $0x178] sm:$0xff]
    %v2546 = vld [vmem:[#allocation9 + $0x180] sm:$0xff]
    %v2547 = vld [vmem:[#allocation9 + $0x188] sm:$0xff]
    %v2548 = vld [vmem:[#allocation9 + $0x190] sm:$0xff]
    %v2549 = vld [vmem:[#allocation9 + $0x198] sm:$0xff]
    %v2550 = vld [vmem:[#allocation9 + $0x1a0] sm:$0xff]
    %v2551 = vld [vmem:[#allocation9 + $0x1a8] sm:$0xff]
    %v2552 = vld [vmem:[#allocation9 + $0x1b0] sm:$0xff]
    %v2553 = vld [vmem:[#allocation9 + $0x1b8] sm:$0xff]
    %v2554 = vld [vmem:[#allocation9 + $0x1c0] sm:$0xff]
    %v2555 = vld [vmem:[#allocation9 + $0x1c8] sm:$0xff]
    %v2556 = vld [vmem:[#allocation9 + $0x1d0] sm:$0xff]
    %v2557 = vld [vmem:[#allocation9 + $0x1d8] sm:$0xff]
    %v2558 = vld [vmem:[#allocation9 + $0x1e0] sm:$0xff]
    %v2559 = vld [vmem:[#allocation9 + $0x1e8] sm:$0xff]
    %v2560 = vld [vmem:[#allocation9 + $0x1f0] sm:$0xff]
    %v2561 = vld [vmem:[#allocation9 + $0x1f8] sm:$0xff]
    %v2562 = vld [vmem:[#allocation11] sm:$0x3]
    %v2564 = vlaneseq
    %v2565 = vshrl.u32 %v2564, 7
    %v2566 = vsub.s32 0, %v2565
    %v2567 = vrot.slane %v2562, %v2566
    %v2568 = vlaneseq
    %v2569 = vshrl.u32 %v2568, 7
    %v2570 = vsub.s32 1, %v2569
    %v2571 = vrot.slane %v2562, %v2570
    %v2638 = vunpack.c.l.b16 %v2498
    %v2639 = vunpack.c.h.b16 %v2498
    %v2640 = vunpack.c.l.b16 %v2499
    %v2641 = vunpack.c.h.b16 %v2499
    %v2642 = vunpack.c.l.b16 %v2500
    %v2643 = vunpack.c.h.b16 %v2500
    %v2644 = vunpack.c.l.b16 %v2501
    %v2645 = vunpack.c.h.b16 %v2501
    %v2646 = vunpack.c.l.b16 %v2502
    %v2647 = vunpack.c.h.b16 %v2502
    %v2648 = vunpack.c.l.b16 %v2503
    %v2649 = vunpack.c.h.b16 %v2503
    %v2650 = vunpack.c.l.b16 %v2504
    %v2651 = vunpack.c.h.b16 %v2504
    %v2652 = vunpack.c.l.b16 %v2505
    %v2653 = vunpack.c.h.b16 %v2505
    %v2654 = vunpack.c.l.b16 %v2506
    %v2655 = vunpack.c.h.b16 %v2506
    %v2656 = vunpack.c.l.b16 %v2507
    %v2657 = vunpack.c.h.b16 %v2507
    %v2658 = vunpack.c.l.b16 %v2508
    %v2659 = vunpack.c.h.b16 %v2508
    %v2660 = vunpack.c.l.b16 %v2509
    %v2661 = vunpack.c.h.b16 %v2509
    %v2662 = vunpack.c.l.b16 %v2510
    %v2663 = vunpack.c.h.b16 %v2510
    %v2664 = vunpack.c.l.b16 %v2511
    %v2665 = vunpack.c.h.b16 %v2511
    %v2666 = vunpack.c.l.b16 %v2512
    %v2667 = vunpack.c.h.b16 %v2512
    %v2668 = vunpack.c.l.b16 %v2513
    %v2669 = vunpack.c.h.b16 %v2513
    %v2670 = vunpack.c.l.b16 %v2514
    %v2671 = vunpack.c.h.b16 %v2514
    %v2672 = vunpack.c.l.b16 %v2515
    %v2673 = vunpack.c.h.b16 %v2515
    %v2674 = vunpack.c.l.b16 %v2516
    %v2675 = vunpack.c.h.b16 %v2516
    %v2676 = vunpack.c.l.b16 %v2517
    %v2677 = vunpack.c.h.b16 %v2517
    %v2678 = vunpack.c.l.b16 %v2518
    %v2679 = vunpack.c.h.b16 %v2518
    %v2680 = vunpack.c.l.b16 %v2519
    %v2681 = vunpack.c.h.b16 %v2519
    %v2682 = vunpack.c.l.b16 %v2520
    %v2683 = vunpack.c.h.b16 %v2520
    %v2684 = vunpack.c.l.b16 %v2521
    %v2685 = vunpack.c.h.b16 %v2521
    %v2686 = vunpack.c.l.b16 %v2522
    %v2687 = vunpack.c.h.b16 %v2522
    %v2688 = vunpack.c.l.b16 %v2523
    %v2689 = vunpack.c.h.b16 %v2523
    %v2690 = vunpack.c.l.b16 %v2524
    %v2691 = vunpack.c.h.b16 %v2524
    %v2692 = vunpack.c.l.b16 %v2525
    %v2693 = vunpack.c.h.b16 %v2525
    %v2694 = vunpack.c.l.b16 %v2526
    %v2695 = vunpack.c.h.b16 %v2526
    %v2696 = vunpack.c.l.b16 %v2527
    %v2697 = vunpack.c.h.b16 %v2527
    %v2698 = vunpack.c.l.b16 %v2528
    %v2699 = vunpack.c.h.b16 %v2528
    %v2700 = vunpack.c.l.b16 %v2529
    %v2701 = vunpack.c.h.b16 %v2529
    %v2702 = vunpack.c.l.b16 %v2530
    %v2703 = vunpack.c.h.b16 %v2530
    %v2704 = vunpack.c.l.b16 %v2531
    %v2705 = vunpack.c.h.b16 %v2531
    %v2706 = vunpack.c.l.b16 %v2532
    %v2707 = vunpack.c.h.b16 %v2532
    %v2708 = vunpack.c.l.b16 %v2533
    %v2709 = vunpack.c.h.b16 %v2533
    %v2710 = vunpack.c.l.b16 %v2534
    %v2711 = vunpack.c.h.b16 %v2534
    %v2712 = vunpack.c.l.b16 %v2535
    %v2713 = vunpack.c.h.b16 %v2535
    %v2714 = vunpack.c.l.b16 %v2536
    %v2715 = vunpack.c.h.b16 %v2536
    %v2716 = vunpack.c.l.b16 %v2537
    %v2717 = vunpack.c.h.b16 %v2537
    %v2718 = vunpack.c.l.b16 %v2538
    %v2719 = vunpack.c.h.b16 %v2538
    %v2720 = vunpack.c.l.b16 %v2539
    %v2721 = vunpack.c.h.b16 %v2539
    %v2722 = vunpack.c.l.b16 %v2540
    %v2723 = vunpack.c.h.b16 %v2540
    %v2724 = vunpack.c.l.b16 %v2541
    %v2725 = vunpack.c.h.b16 %v2541
    %v2726 = vunpack.c.l.b16 %v2542
    %v2727 = vunpack.c.h.b16 %v2542
    %v2728 = vunpack.c.l.b16 %v2543
    %v2729 = vunpack.c.h.b16 %v2543
    %v2730 = vunpack.c.l.b16 %v2544
    %v2731 = vunpack.c.h.b16 %v2544
    %v2732 = vunpack.c.l.b16 %v2545
    %v2733 = vunpack.c.h.b16 %v2545
    %v2734 = vunpack.c.l.b16 %v2546
    %v2735 = vunpack.c.h.b16 %v2546
    %v2736 = vunpack.c.l.b16 %v2547
    %v2737 = vunpack.c.h.b16 %v2547
    %v2738 = vunpack.c.l.b16 %v2548
    %v2739 = vunpack.c.h.b16 %v2548
    %v2740 = vunpack.c.l.b16 %v2549
    %v2741 = vunpack.c.h.b16 %v2549
    %v2742 = vunpack.c.l.b16 %v2550
    %v2743 = vunpack.c.h.b16 %v2550
    %v2744 = vunpack.c.l.b16 %v2551
    %v2745 = vunpack.c.h.b16 %v2551
    %v2746 = vunpack.c.l.b16 %v2552
    %v2747 = vunpack.c.h.b16 %v2552
    %v2748 = vunpack.c.l.b16 %v2553
    %v2749 = vunpack.c.h.b16 %v2553
    %v2750 = vunpack.c.l.b16 %v2554
    %v2751 = vunpack.c.h.b16 %v2554
    %v2752 = vunpack.c.l.b16 %v2555
    %v2753 = vunpack.c.h.b16 %v2555
    %v2754 = vunpack.c.l.b16 %v2556
    %v2755 = vunpack.c.h.b16 %v2556
    %v2756 = vunpack.c.l.b16 %v2557
    %v2757 = vunpack.c.h.b16 %v2557
    %v2758 = vunpack.c.l.b16 %v2558
    %v2759 = vunpack.c.h.b16 %v2558
    %v2760 = vunpack.c.l.b16 %v2559
    %v2761 = vunpack.c.h.b16 %v2559
    %v2762 = vunpack.c.l.b16 %v2560
    %v2763 = vunpack.c.h.b16 %v2560
    %v2764 = vunpack.c.l.b16 %v2561
    %v2765 = vunpack.c.h.b16 %v2561
    %v2766 = vpack.c.b16 %v2640, %v2638
    %v2767 = vpack.c.b16 %v2641, %v2639
    %v2768 = vpack.c.b16 %v2644, %v2642
    %v2769 = vpack.c.b16 %v2645, %v2643
    %v2770 = vpack.c.b16 %v2648, %v2646
    %v2771 = vpack.c.b16 %v2649, %v2647
    %v2772 = vpack.c.b16 %v2652, %v2650
    %v2773 = vpack.c.b16 %v2653, %v2651
    %v2774 = vpack.c.b16 %v2656, %v2654
    %v2775 = vpack.c.b16 %v2657, %v2655
    %v2776 = vpack.c.b16 %v2660, %v2658
    %v2777 = vpack.c.b16 %v2661, %v2659
    %v2778 = vpack.c.b16 %v2664, %v2662
    %v2779 = vpack.c.b16 %v2665, %v2663
    %v2780 = vpack.c.b16 %v2668, %v2666
    %v2781 = vpack.c.b16 %v2669, %v2667
    %v2782 = vpack.c.b16 %v2672, %v2670
    %v2783 = vpack.c.b16 %v2673, %v2671
    %v2784 = vpack.c.b16 %v2676, %v2674
    %v2785 = vpack.c.b16 %v2677, %v2675
    %v2786 = vpack.c.b16 %v2680, %v2678
    %v2787 = vpack.c.b16 %v2681, %v2679
    %v2788 = vpack.c.b16 %v2684, %v2682
    %v2789 = vpack.c.b16 %v2685, %v2683
    %v2790 = vpack.c.b16 %v2688, %v2686
    %v2791 = vpack.c.b16 %v2689, %v2687
    %v2792 = vpack.c.b16 %v2692, %v2690
    %v2793 = vpack.c.b16 %v2693, %v2691
    %v2794 = vpack.c.b16 %v2696, %v2694
    %v2795 = vpack.c.b16 %v2697, %v2695
    %v2796 = vpack.c.b16 %v2700, %v2698
    %v2797 = vpack.c.b16 %v2701, %v2699
    %v2798 = vpack.c.b16 %v2704, %v2702
    %v2799 = vpack.c.b16 %v2705, %v2703
    %v2800 = vpack.c.b16 %v2708, %v2706
    %v2801 = vpack.c.b16 %v2709, %v2707
    %v2802 = vpack.c.b16 %v2712, %v2710
    %v2803 = vpack.c.b16 %v2713, %v2711
    %v2804 = vpack.c.b16 %v2716, %v2714
    %v2805 = vpack.c.b16 %v2717, %v2715
    %v2806 = vpack.c.b16 %v2720, %v2718
    %v2807 = vpack.c.b16 %v2721, %v2719
    %v2808 = vpack.c.b16 %v2724, %v2722
    %v2809 = vpack.c.b16 %v2725, %v2723
    %v2810 = vpack.c.b16 %v2728, %v2726
    %v2811 = vpack.c.b16 %v2729, %v2727
    %v2812 = vpack.c.b16 %v2732, %v2730
    %v2813 = vpack.c.b16 %v2733, %v2731
    %v2814 = vpack.c.b16 %v2736, %v2734
    %v2815 = vpack.c.b16 %v2737, %v2735
    %v2816 = vpack.c.b16 %v2740, %v2738
    %v2817 = vpack.c.b16 %v2741, %v2739
    %v2818 = vpack.c.b16 %v2744, %v2742
    %v2819 = vpack.c.b16 %v2745, %v2743
    %v2820 = vpack.c.b16 %v2748, %v2746
    %v2821 = vpack.c.b16 %v2749, %v2747
    %v2822 = vpack.c.b16 %v2752, %v2750
    %v2823 = vpack.c.b16 %v2753, %v2751
    %v2824 = vpack.c.b16 %v2756, %v2754
    %v2825 = vpack.c.b16 %v2757, %v2755
    %v2826 = vpack.c.b16 %v2760, %v2758
    %v2827 = vpack.c.b16 %v2761, %v2759
    %v2828 = vpack.c.b16 %v2764, %v2762
    %v2829 = vpack.c.b16 %v2765, %v2763
    %2894 = vmatprep.subr.bf16.mxu0 %v2767
    %2895 = vmatpush1.bf16.msra.mxu0 %v2766
    %2896 = vmatprep.subr.bf16.mxu0 %v2769
    %2897 = vmatpush1.bf16.msra.mxu0 %v2768
    %2898 = vmatprep.subr.bf16.mxu0 %v2771
    %2899 = vmatpush1.bf16.msra.mxu0 %v2770
    %2900 = vmatprep.subr.bf16.mxu0 %v2773
    %2901 = vmatpush1.bf16.msra.mxu0 %v2772
    %2902 = vmatprep.subr.bf16.mxu0 %v2775
    %2903 = vmatpush1.bf16.msra.mxu0 %v2774
    %2904 = vmatprep.subr.bf16.mxu0 %v2777
    %2905 = vmatpush1.bf16.msra.mxu0 %v2776
    %2906 = vmatprep.subr.bf16.mxu0 %v2779
    %2907 = vmatpush1.bf16.msra.mxu0 %v2778
    %2908 = vmatprep.subr.bf16.mxu0 %v2781
    %2909 = vmatpush1.bf16.msra.mxu0 %v2780
    %2910 = vmatprep.subr.bf16.mxu0 %v2783
    %2911 = vmatpush1.bf16.msra.mxu0 %v2782
    %2912 = vmatprep.subr.bf16.mxu0 %v2785
    %2913 = vmatpush1.bf16.msra.mxu0 %v2784
    %2914 = vmatprep.subr.bf16.mxu0 %v2787
    %2915 = vmatpush1.bf16.msra.mxu0 %v2786
    %2916 = vmatprep.subr.bf16.mxu0 %v2789
    %2917 = vmatpush1.bf16.msra.mxu0 %v2788
    %2918 = vmatprep.subr.bf16.mxu0 %v2791
    %2919 = vmatpush1.bf16.msra.mxu0 %v2790
    %2920 = vmatprep.subr.bf16.mxu0 %v2793
    %2921 = vmatpush1.bf16.msra.mxu0 %v2792
    %2922 = vmatprep.subr.bf16.mxu0 %v2795
    %2923 = vmatpush1.bf16.msra.mxu0 %v2794
    %2924 = vmatprep.subr.bf16.mxu0 %v2797
    %2925 = vmatpush1.bf16.msra.mxu0 %v2796
    %2926 = vmatprep.mubr.bf16.mxu0 %v2467
    %2927 = vmatmul.mubr.bf16.gmra.mrb[0].mxu0 %v2466
    %v2928 = vpop.f32.mrb[0].mxu0
    %v2929 = vadd.f32 %v2567, %v2928
    %v2930 = vpop.f32.mrb[0].mxu0
    %v2931 = vadd.f32 %v2571, %v2930
    %v2932 = vpop.f32.mrb[0].mxu0
    %v2933 = vadd.f32 %v2567, %v2932
    %v2934 = vpop.f32.mrb[0].mxu0
    %v2935 = vadd.f32 %v2571, %v2934
    %2936 = vmatprep.mubr.bf16.mxu0 %v2471
    %2937 = vmatmul.mubr.bf16.gmra.mrb[0].mxu0 %v2470
    %v2938 = vpop.f32.mrb[0].mxu0
    %v2939 = vadd.f32 %v2567, %v2938
    %v2940 = vpop.f32.mrb[0].mxu0
    %v2941 = vadd.f32 %v2571, %v2940
    %v2942 = vpop.f32.mrb[0].mxu0
    %v2943 = vadd.f32 %v2567, %v2942
    %v2944 = vpop.f32.mrb[0].mxu0
    %v2945 = vadd.f32 %v2571, %v2944
    %2946 = vmatprep.mubr.bf16.mxu0 %v2475
    %2947 = vmatmul.mubr.bf16.gmra.mrb[0].mxu0 %v2474
    %v2948 = vpop.f32.mrb[0].mxu0
    %v2949 = vadd.f32 %v2567, %v2948
    %v2950 = vpop.f32.mrb[0].mxu0
    %v2951 = vadd.f32 %v2571, %v2950
    %v2952 = vpop.f32.mrb[0].mxu0
    %v2953 = vadd.f32 %v2567, %v2952
    %v2954 = vpop.f32.mrb[0].mxu0
    %v2955 = vadd.f32 %v2571, %v2954
    %2956 = vmatprep.mubr.bf16.mxu0 %v2479
    %2957 = vmatmul.mubr.bf16.gmra.mrb[0].mxu0 %v2478
    %v2958 = vpop.f32.mrb[0].mxu0
    %v2959 = vadd.f32 %v2567, %v2958
    %v2960 = vpop.f32.mrb[0].mxu0
    %v2961 = vadd.f32 %v2571, %v2960
    %v2962 = vpop.f32.mrb[0].mxu0
    %v2963 = vadd.f32 %v2567, %v2962
    %v2964 = vpop.f32.mrb[0].mxu0
    %v2965 = vadd.f32 %v2571, %v2964
    %2966 = vmatprep.mubr.bf16.mxu0 %v2483
    %2967 = vmatmul.mubr.bf16.gmra.mrb[0].mxu0 %v2482
    %v2968 = vpop.f32.mrb[0].mxu0
    %v2969 = vadd.f32 %v2567, %v2968
    %v2970 = vpop.f32.mrb[0].mxu0
    %v2971 = vadd.f32 %v2571, %v2970
    %v2972 = vpop.f32.mrb[0].mxu0
    %v2973 = vadd.f32 %v2567, %v2972
    %v2974 = vpop.f32.mrb[0].mxu0
    %v2975 = vadd.f32 %v2571, %v2974
    %2976 = vmatprep.mubr.bf16.mxu0 %v2487
    %2977 = vmatmul.mubr.bf16.gmra.mrb[0].mxu0 %v2486
    %v2978 = vpop.f32.mrb[0].mxu0
    %v2979 = vadd.f32 %v2567, %v2978
    %v2980 = vpop.f32.mrb[0].mxu0
    %v2981 = vadd.f32 %v2571, %v2980
    %v2982 = vpop.f32.mrb[0].mxu0
    %v2983 = vadd.f32 %v2567, %v2982
    %v2984 = vpop.f32.mrb[0].mxu0
    %v2985 = vadd.f32 %v2571, %v2984
    %2986 = vmatprep.mubr.bf16.mxu0 %v2491
    %2987 = vmatmul.mubr.bf16.gmra.mrb[0].mxu0 %v2490
    %v2988 = vpop.f32.mrb[0].mxu0
    %v2989 = vadd.f32 %v2567, %v2988
    %v2990 = vpop.f32.mrb[0].mxu0
    %v2991 = vadd.f32 %v2571, %v2990
    %v2992 = vpop.f32.mrb[0].mxu0
    %v2993 = vadd.f32 %v2567, %v2992
    %v2994 = vpop.f32.mrb[0].mxu0
    %v2995 = vadd.f32 %v2571, %v2994
    %2996 = vmatprep.mubr.bf16.mxu0 %v2495
    %2997 = vmatmul.mubr.bf16.gmra.mrb[0].mxu0 %v2494
    %v2998 = vpop.f32.mrb[0].mxu0
    %v2999 = vadd.f32 %v2567, %v2998
    %v3000 = vpop.f32.mrb[0].mxu0
    %v3001 = vadd.f32 %v2571, %v3000
    %v3002 = vpop.f32.mrb[0].mxu0
    %v3003 = vadd.f32 %v2567, %v3002
    %v3004 = vpop.f32.mrb[0].mxu0
    %v3005 = vadd.f32 %v2571, %v3004
    %3006 = vdwg.mxu0
    %3007 = vmatprep.subr.bf16.mxu0 %v2799
    %3008 = vmatpush1.bf16.msra.mxu0 %v2798
    %3009 = vmatprep.subr.bf16.mxu0 %v2801
    %3010 = vmatpush1.bf16.msra.mxu0 %v2800
    %3011 = vmatprep.subr.bf16.mxu0 %v2803
    %3012 = vmatpush1.bf16.msra.mxu0 %v2802
    %3013 = vmatprep.subr.bf16.mxu0 %v2805
    %3014 = vmatpush1.bf16.msra.mxu0 %v2804
    %3015 = vmatprep.subr.bf16.mxu0 %v2807
    %3016 = vmatpush1.bf16.msra.mxu0 %v2806
    %3017 = vmatprep.subr.bf16.mxu0 %v2809
    %3018 = vmatpush1.bf16.msra.mxu0 %v2808
    %3019 = vmatprep.subr.bf16.mxu0 %v2811
    %3020 = vmatpush1.bf16.msra.mxu0 %v2810
    %3021 = vmatprep.subr.bf16.mxu0 %v2813
    %3022 = vmatpush1.bf16.msra.mxu0 %v2812
    %3023 = vmatprep.subr.bf16.mxu0 %v2815
    %3024 = vmatpush1.bf16.msra.mxu0 %v2814
    %3025 = vmatprep.subr.bf16.mxu0 %v2817
    %3026 = vmatpush1.bf16.msra.mxu0 %v2816
    %3027 = vmatprep.subr.bf16.mxu0 %v2819
    %3028 = vmatpush1.bf16.msra.mxu0 %v2818
    %3029 = vmatprep.subr.bf16.mxu0 %v2821
    %3030 = vmatpush1.bf16.msra.mxu0 %v2820
    %3031 = vmatprep.subr.bf16.mxu0 %v2823
    %3032 = vmatpush1.bf16.msra.mxu0 %v2822
    %3033 = vmatprep.subr.bf16.mxu0 %v2825
    %3034 = vmatpush1.bf16.msra.mxu0 %v2824
    %3035 = vmatprep.subr.bf16.mxu0 %v2827
    %3036 = vmatpush1.bf16.msra.mxu0 %v2826
    %3037 = vmatprep.subr.bf16.mxu0 %v2829
    %3038 = vmatpush1.bf16.msra.mxu0 %v2828
    %3039 = vmatprep.mubr.bf16.mxu0 %v2469
    %3040 = vmatmul.mubr.bf16.gmra.mrb[0].mxu0 %v2468
    %v3041 = vpop.f32.mrb[0].mxu0
    %v3042 = vadd.f32 %v2929, %v3041
    %v3043 = vpop.f32.mrb[0].mxu0
    %v3044 = vadd.f32 %v2931, %v3043
    %v3045 = vpop.f32.mrb[0].mxu0
    %v3046 = vadd.f32 %v2933, %v3045
    %v3047 = vpop.f32.mrb[0].mxu0
    %v3048 = vadd.f32 %v2935, %v3047
    %3049 = vmatprep.mubr.bf16.mxu0 %v2473
    %3050 = vmatmul.mubr.bf16.gmra.mrb[0].mxu0 %v2472
    %v3051 = vpop.f32.mrb[0].mxu0
    %v3052 = vadd.f32 %v2939, %v3051
    %v3053 = vpop.f32.mrb[0].mxu0
    %v3054 = vadd.f32 %v2941, %v3053
    %v3055 = vpop.f32.mrb[0].mxu0
    %v3056 = vadd.f32 %v2943, %v3055
    %v3057 = vpop.f32.mrb[0].mxu0
    %v3058 = vadd.f32 %v2945, %v3057
    %3059 = vmatprep.mubr.bf16.mxu0 %v2477
    %3060 = vmatmul.mubr.bf16.gmra.mrb[0].mxu0 %v2476
    %v3061 = vpop.f32.mrb[0].mxu0
    %v3062 = vadd.f32 %v2949, %v3061
    %v3063 = vpop.f32.mrb[0].mxu0
    %v3064 = vadd.f32 %v2951, %v3063
    %v3065 = vpop.f32.mrb[0].mxu0
    %v3066 = vadd.f32 %v2953, %v3065
    %v3067 = vpop.f32.mrb[0].mxu0
    %v3068 = vadd.f32 %v2955, %v3067
    %3069 = vmatprep.mubr.bf16.mxu0 %v2481
    %3070 = vmatmul.mubr.bf16.gmra.mrb[0].mxu0 %v2480
    %v3071 = vpop.f32.mrb[0].mxu0
    %v3072 = vadd.f32 %v2959, %v3071
    %v3073 = vpop.f32.mrb[0].mxu0
    %v3074 = vadd.f32 %v2961, %v3073
    %v3075 = vpop.f32.mrb[0].mxu0
    %v3076 = vadd.f32 %v2963, %v3075
    %v3077 = vpop.f32.mrb[0].mxu0
    %v3078 = vadd.f32 %v2965, %v3077
    %3079 = vmatprep.mubr.bf16.mxu0 %v2485
    %3080 = vmatmul.mubr.bf16.gmra.mrb[0].mxu0 %v2484
    %v3081 = vpop.f32.mrb[0].mxu0
    %v3082 = vadd.f32 %v2969, %v3081
    %v3083 = vpop.f32.mrb[0].mxu0
    %v3084 = vadd.f32 %v2971, %v3083
    %v3085 = vpop.f32.mrb[0].mxu0
    %v3086 = vadd.f32 %v2973, %v3085
    %v3087 = vpop.f32.mrb[0].mxu0
    %v3088 = vadd.f32 %v2975, %v3087
    %3089 = vmatprep.mubr.bf16.mxu0 %v2489
    %3090 = vmatmul.mubr.bf16.gmra.mrb[0].mxu0 %v2488
    %v3091 = vpop.f32.mrb[0].mxu0
    %v3092 = vadd.f32 %v2979, %v3091
    %v3093 = vpop.f32.mrb[0].mxu0
    %v3094 = vadd.f32 %v2981, %v3093
    %v3095 = vpop.f32.mrb[0].mxu0
    %v3096 = vadd.f32 %v2983, %v3095
    %v3097 = vpop.f32.mrb[0].mxu0
    %v3098 = vadd.f32 %v2985, %v3097
    %3099 = vmatprep.mubr.bf16.mxu0 %v2493
    %3100 = vmatmul.mubr.bf16.gmra.mrb[0].mxu0 %v2492
    %v3101 = vpop.f32.mrb[0].mxu0
    %v3102 = vadd.f32 %v2989, %v3101
    %v3103 = vpop.f32.mrb[0].mxu0
    %v3104 = vadd.f32 %v2991, %v3103
    %v3105 = vpop.f32.mrb[0].mxu0
    %v3106 = vadd.f32 %v2993, %v3105
    %v3107 = vpop.f32.mrb[0].mxu0
    %v3108 = vadd.f32 %v2995, %v3107
    %3109 = vmatprep.mubr.bf16.mxu0 %v2497
    %3110 = vmatmul.mubr.bf16.gmra.mrb[0].mxu0 %v2496
    %v3111 = vpop.f32.mrb[0].mxu0
    %v3112 = vadd.f32 %v2999, %v3111
    %v3113 = vpop.f32.mrb[0].mxu0
    %v3114 = vadd.f32 %v3001, %v3113
    %v3115 = vpop.f32.mrb[0].mxu0
    %v3116 = vadd.f32 %v3003, %v3115
    %v3117 = vpop.f32.mrb[0].mxu0
    %v3118 = vadd.f32 %v3005, %v3117
    %3119 = vdwg.mxu0
    %v3120 = vpack.c.bf16 %v3046, %v3042
    %v3121 = vpack.c.bf16 %v3048, %v3044
    %v3122 = vpack.c.bf16 %v3056, %v3052
    %v3123 = vpack.c.bf16 %v3058, %v3054
    %v3124 = vpack.c.bf16 %v3066, %v3062
    %v3125 = vpack.c.bf16 %v3068, %v3064
    %v3126 = vpack.c.bf16 %v3076, %v3072
    %v3127 = vpack.c.bf16 %v3078, %v3074
    %v3128 = vpack.c.bf16 %v3086, %v3082
    %v3129 = vpack.c.bf16 %v3088, %v3084
    %v3130 = vpack.c.bf16 %v3096, %v3092
    %v3131 = vpack.c.bf16 %v3098, %v3094
    %v3132 = vpack.c.bf16 %v3106, %v3102
    %v3133 = vpack.c.bf16 %v3108, %v3104
    %v3134 = vpack.c.bf16 %v3116, %v3112
    %v3135 = vpack.c.bf16 %v3118, %v3114
    %v3136 = vmul.bf16 %v3120, 1045249613
    %v3137 = vmul.bf16 %v3121, 1045249613
    %v3138 = vmul.bf16 %v3122, 1045249613
    %v3139 = vmul.bf16 %v3123, 1045249613
    %v3140 = vmul.bf16 %v3124, 1045249613
    %v3141 = vmul.bf16 %v3125, 1045249613
    %v3142 = vmul.bf16 %v3126, 1045249613
    %v3143 = vmul.bf16 %v3127, 1045249613
    %v3144 = vmul.bf16 %v3128, 1045249613
    %v3145 = vmul.bf16 %v3129, 1045249613
    %v3146 = vmul.bf16 %v3130, 1045249613
    %v3147 = vmul.bf16 %v3131, 1045249613
    %v3148 = vmul.bf16 %v3132, 1045249613
    %v3149 = vmul.bf16 %v3133, 1045249613
    %v3150 = vmul.bf16 %v3134, 1045249613
    %v3151 = vmul.bf16 %v3135, 1045249613
    %v3152 = vmax.bf16 %v3120, %v3136
    %v3153 = vmax.bf16 %v3121, %v3137
    %v3154 = vmax.bf16 %v3122, %v3138
    %v3155 = vmax.bf16 %v3123, %v3139
    %v3156 = vmax.bf16 %v3124, %v3140
    %v3157 = vmax.bf16 %v3125, %v3141
    %v3158 = vmax.bf16 %v3126, %v3142
    %v3159 = vmax.bf16 %v3127, %v3143
    %v3160 = vmax.bf16 %v3128, %v3144
    %v3161 = vmax.bf16 %v3129, %v3145
    %v3162 = vmax.bf16 %v3130, %v3146
    %v3163 = vmax.bf16 %v3131, %v3147
    %v3164 = vmax.bf16 %v3132, %v3148
    %v3165 = vmax.bf16 %v3133, %v3149
    %v3166 = vmax.bf16 %v3134, %v3150
    %v3167 = vmax.bf16 %v3135, %v3151
    %v3168 = vld [vmem:[#allocation12] sm:$0x3]
    %v3169 = vld [vmem:[#allocation2] sm:$0x1]
    %3171 = vset.pattern.permute.xlu0 0
    %3172 = vperm.xlu0 %3171, %v3169
    %v3173 = vpop.permute.xlu0 %3172
    %v3175 = vlaneseq
    %v3176 = vshrl.u32 %v3175, 7
    %v3177 = vsub.s32 0, %v3176
    %v3178 = vrot.slane %v3173, %v3177
    %v3181 = vunpack.c.l.s4 1966171168
    %v3182 = vunpack.c.0.s8 %v3181
    %v3183 = vlaneseq
    %v3184 = vshrl.u32 %v3183, 7
    %v3185 = vsub.s32 %v3182, %v3184
    %v3186 = vrot.slane %v3168, %v3185
    %v3187 = vcombine.high %v3186, %v3186
    %v3189 = vunpack.c.l.s4 1966171168
    %v3190 = vunpack.c.0.s8 %v3189
    %v3191 = vlaneseq
    %v3192 = vshrl.u32 %v3191, 7
    %v3193 = vsub.s32 %v3190, %v3192
    %v3194 = vrot.slane %v3186, %v3193
    %v3196 = vunpack.c.l.s4 1966171168
    %v3197 = vunpack.c.0.s8 %v3196
    %v3198 = vlaneseq
    %v3199 = vshrl.u32 %v3198, 7
    %v3200 = vsub.s32 %v3197, %v3199
    %v3201 = vrot.slane %v3187, %v3200
    %3204 = vmatprep.subr.bf16.mxu0 %v3153
    %3205 = vmatpush1.bf16.xpose.msra.mxu0 %v3152
    %3206 = vmatprep.subr.bf16.mxu0 %v3155
    %3207 = vmatpush1.bf16.xpose.msra.mxu0 %v3154
    %3208 = vmatprep.subr.bf16.mxu0 %v3157
    %3209 = vmatpush1.bf16.xpose.msra.mxu0 %v3156
    %3210 = vmatprep.subr.bf16.mxu0 %v3159
    %3211 = vmatpush1.bf16.xpose.msra.mxu0 %v3158
    %3212 = vmatprep.subr.bf16.mxu0 %v3161
    %3213 = vmatpush1.bf16.xpose.msra.mxu0 %v3160
    %3214 = vmatprep.subr.bf16.mxu0 %v3163
    %3215 = vmatpush1.bf16.xpose.msra.mxu0 %v3162
    %3216 = vmatprep.subr.bf16.mxu0 %v3165
    %3217 = vmatpush1.bf16.xpose.msra.mxu0 %v3164
    %3218 = vmatprep.subr.bf16.mxu0 %v3167
    %3219 = vmatpush1.bf16.xpose.msra.mxu0 %v3166
    %3220 = vmatprep.subr.bf16.mxu0 0
    %3221 = vmatpush1.bf16.xpose.msra.mxu0 0
    %3222 = vmatprep.subr.bf16.mxu0 0
    %3223 = vmatpush1.bf16.xpose.msra.mxu0 0
    %3224 = vmatprep.subr.bf16.mxu0 0
    %3225 = vmatpush1.bf16.xpose.msra.mxu0 0
    %3226 = vmatprep.subr.bf16.mxu0 0
    %3227 = vmatpush1.bf16.xpose.msra.mxu0 0
    %3228 = vmatprep.subr.bf16.mxu0 0
    %3229 = vmatpush1.bf16.xpose.msra.mxu0 0
    %3230 = vmatprep.subr.bf16.mxu0 0
    %3231 = vmatpush1.bf16.xpose.msra.mxu0 0
    %3232 = vmatprep.subr.bf16.mxu0 0
    %3233 = vmatpush1.bf16.xpose.msra.mxu0 0
    %3234 = vmatprep.subr.bf16.mxu0 0
    %3235 = vmatpush1.bf16.xpose.msra.mxu0 0
    %3236 = vmatprep.mubr.bf16.mxu0 %v3201
    %3237 = vmatmul.mubr.bf16.gmra.mrb[0].mxu0 %v3194
    %v3238 = vpop.f32.mrb[0].mxu0
    %v3239 = vadd.f32 %v3178, %v3238
    %v3240 = vpop.f32.mrb[0].mxu0
    %v3241 = vpop.f32.mrb[0].mxu0
    %v3242 = vpop.f32.mrb[0].mxu0
    %3243 = vdwg.mxu0
    %v3244 = vxor.u32 %v3239, 2147483648
    %v3245 = vmul.f32 %v3244, 1.442695
    %v3246 = vpow.pop %v3245
    %v3247 = vadd.f32 %v3246, 1.0
    %v3248 = vrcp.pop %v3247
    %v3249 = vmul.f32 1.0, %v3248
    %3250 = vst [vmem:[#allocation14] sm:$0x1] %v3249
    // Predicated region
    $region54: #{discriminator_forward.1} parent=1 // pred_check
      _
    $region55: #{discriminator_forward.1} parent=1 // pred_check_branch
      %3252 = sbr.rel (0) target = $region57
    $region56: #{discriminator_forward.1} parent=1 // pred_region
      %s3254 = ssub.s32 16, 16
      %3255 = vsyncadd [#allocation5], %s3254
      %s3257 = sshll.u32 [#allocation14], 4
      %s3258 = int_to_ptr.vmem [resolvable:$true] %s3257
      %3260 = dma.vmem_to_hbm [thread:$0]  %s3258, 16, %s7, [#allocation5]
    $region57: #{discriminator_forward.1} parent=1 // pred_fallthru
      _
    // Predicated region
    $region58: #{discriminator_forward.1} parent=1 // pred_check
      _
    $region59: #{discriminator_forward.1} parent=1 // pred_check_branch
      %3262 = sbr.rel (0) target = $region61
    $region60: #{discriminator_forward.1} parent=1 // pred_region
      %3263 = dma.done [#allocation5], 16
    $region61: #{discriminator_forward.1} parent=1 // pred_fallthru
      _
    %3264 = vsyncpa [#allocation4], 1
    %3265 = vsyncpa [#allocation7], 1
    %3266 = vsyncpa [#allocation10], 1
    %3267 = vsyncpa [#allocation13], 1
    %3268 = vsyncpa [#allocation5], 1

</llo_original>
